<compile_context>
chip_gen: v5e
topology: v5e:2x2
jax: 0.10.0
libtpu: 0.0.40
codegen_flags: <defaults>
</compile_context>

<pallas_src>
import functools

import jax
import jax.numpy as jnp
from jax.experimental import pallas as pl
from jax.experimental.pallas import tpu as pltpu


_GATHER_UNROLL = 8


def gmf_kernel(uidx_ref, iidx_ref,        # scalar prefetch: (Bp,) int32 in SMEM
               bias_ref,                  # (1,) f32 in SMEM
               user_tbl_ref,              # (num_users, E) f32, VMEM resident
               item_tbl_ref,              # (num_items, E) f32, VMEM resident (pre-scaled by W)
               o_ref,                     # (1, tb) f32 output block (lane-dense)
               prod_buf):                 # scratch: (tb, E) f32 VMEM
    tb, _ = prod_buf.shape
    base = pl.multiple_of(pl.program_id(0) * tb, 128)

    # Fused gather + elementwise product straight out of the VMEM-resident
    # tables: one dynamic-row load per table plus one store of the product per
    # batch row. Unrolled by _GATHER_UNROLL to amortize loop overhead.
    @pl.loop(0, tb // _GATHER_UNROLL)
    def _gather(g):
        b0 = pl.multiple_of(g * _GATHER_UNROLL, _GATHER_UNROLL)
        for j in range(_GATHER_UNROLL):
            b = b0 + j
            u = uidx_ref[base + b]
            it = iidx_ref[base + b]
            prod_buf[pl.ds(b, 1), :] = (
                user_tbl_ref[pl.ds(u, 1), :] * item_tbl_ref[pl.ds(it, 1), :])

    # Weighted reduce (weight already folded into the item table) + bias,
    # emitted as a lane-dense (1, tb) row so the store is an unmasked vst.
    row = jnp.sum(prod_buf[...], axis=-1) + bias_ref[0]          # (tb,)  XLU reduce
    o_ref[...] = row.reshape(1, tb).astype(o_ref.dtype)


def _cdiv(a, b):
    return -(-a // b)


def _round_up(x, m):
    return ((x + m - 1) // m) * m


@functools.partial(jax.jit, static_argnames=("tb_max",))
def gmf_forward(user_indices, item_indices, user_table, item_table, w, bias,
                *, tb_max=512):
    """Fused GMF forward: gather + elementwise product + 1-wide linear, one kernel.

    user_indices / item_indices: (B,) integer ids
    user_table: (num_users, E) f32; item_table: (num_items, E) f32
    w: (1, E) f32 (native nn.Linear(E, 1).weight layout); bias: (1,) f32
    Returns: (B,) f32, matching the PyTorch module's `.view(-1)` output.
    """
    B = user_indices.shape[0]
    num_users, E = user_table.shape
    num_items = item_table.shape[0]

    # Batch tile: at least 2 grid steps whenever B allows (keeps both v7x TCs
    # busy under "parallel"), capped at tb_max so tiles stay large on
    # single-TC v5e/v6e.
    tb = min(_round_up(tb_max, 128), max(128, _round_up(_cdiv(B, 2), 128)))
    n_steps = _cdiv(B, tb)
    Bp = n_steps * tb

    uidx = user_indices.astype(jnp.int32)
    iidx = item_indices.astype(jnp.int32)
    if Bp != B:
        # Padded rows gather (valid) row 0 and are sliced off below.
        uidx = jnp.pad(uidx, (0, Bp - B))
        iidx = jnp.pad(iidx, (0, Bp - B))

    # Fold the 1-wide linear weight into the item table once in the wrapper.
    item_table_scaled = item_table * w.reshape(1, E)

    # Scoped-VMEM budget (inputs are double-buffered by the pipeline).
    table_bytes = 2 * 4 * (num_users * E + num_items * E)
    vmem_needed = table_bytes + 4 * tb * E + 2 * 4 * tb + (1 << 20)
    compiler_kwargs = dict(dimension_semantics=("parallel",))
    if vmem_needed > (16 << 20):     # v5e scoped default; v6e/v7x default is 32 MiB
        compiler_kwargs["vmem_limit_bytes"] = min(vmem_needed, 64 << 20)

    out = pl.pallas_call(
        gmf_kernel,
        out_shape=jax.ShapeDtypeStruct((1, Bp), jnp.float32),
        grid_spec=pltpu.PrefetchScalarGridSpec(
            num_scalar_prefetch=2,                  # uidx, iidx -> SMEM
            grid=(n_steps,),
            in_specs=[
                pl.BlockSpec((1,), lambda i, u, it: (0,),
                             memory_space=pltpu.MemorySpace.SMEM),        # bias
                pl.BlockSpec((num_users, E), lambda i, u, it: (0, 0)),    # user table (VMEM)
                pl.BlockSpec((num_items, E), lambda i, u, it: (0, 0)),    # item table * W (VMEM)
            ],
            out_specs=pl.BlockSpec((1, tb), lambda i, u, it: (0, i)),
            scratch_shapes=[
                pltpu.VMEM((tb, E), jnp.float32),   # gathered u*v products
            ],
        ),
        compiler_params=pltpu.CompilerParams(**compiler_kwargs),
    )(uidx, iidx, bias, user_table, item_table_scaled)
    return out.reshape(-1)[:B]


def init_gmf_params(key, num_users, num_items, embedding_dim):
    """Deterministic init matching the PyTorch module's _init_weights."""
    k_u, k_i, k_w = jax.random.split(key, 3)
    user_table = 0.01 * jax.random.normal(k_u, (num_users, embedding_dim),
                                          dtype=jnp.float32)
    item_table = 0.01 * jax.random.normal(k_i, (num_items, embedding_dim),
                                          dtype=jnp.float32)
    # nn.Linear(E, 1).weight with kaiming_uniform_(a=1): U(-sqrt(3/E), sqrt(3/E)),
    # kept in its native lane-dense (1, E) layout.
    bound = float(jnp.sqrt(3.0 / embedding_dim))
    w = jax.random.uniform(k_w, (1, embedding_dim), dtype=jnp.float32,
                           minval=-bound, maxval=bound)
    bias = jnp.zeros((1,), dtype=jnp.float32)
    return user_table, item_table, w, bias


if __name__ == "__main__":
    num_users, num_items, embedding_dim = 1000, 2000, 32
    batch = 1000                      # deliberately not a multiple of the tile

    key = jax.random.PRNGKey(0)
    k_params, k_u, k_i = jax.random.split(key, 3)
    user_table, item_table, w, bias = init_gmf_params(
        k_params, num_users, num_items, embedding_dim)

    user_indices = jax.random.randint(k_u, (batch,), 0, num_users, dtype=jnp.int32)
    item_indices = jax.random.randint(k_i, (batch,), 0, num_items, dtype=jnp.int32)

    out = gmf_forward(user_indices, item_indices, user_table, item_table, w, bias)
    out = jax.block_until_ready(out)          # grid = 2 steps of 512 rows

    # Plain-JAX reference (same math as the PyTorch forward).
    user_emb = jnp.take(user_table, user_indices, axis=0)
    item_emb = jnp.take(item_table, item_indices, axis=0)
    ref = jnp.sum(user_emb * item_emb * w, axis=-1) + bias[0]

    assert out.shape == (batch,)
    assert jnp.allclose(out, ref, atol=1e-5, rtol=1e-5), \
        float(jnp.max(jnp.abs(out - ref)))
    print("KERNEL_OK")
</pallas_src>

<mosaic_0001>
module attributes {stable_mosaic.version = 11 : i64} {
  func.func @gmf_kernel(%arg0: i32, %arg1: memref<1024xi32, #tpu.memory_space<smem>>, %arg2: memref<1024xi32, #tpu.memory_space<smem>>, %arg3: memref<1xf32, #tpu.memory_space<smem>>, %arg4: memref<1000x32xf32, #tpu.memory_space<vmem>>, %arg5: memref<2000x32xf32, #tpu.memory_space<vmem>>, %arg6: memref<1x512xf32, #tpu.memory_space<vmem>>, %arg7: memref<512x32xf32, #tpu.memory_space<vmem>>) attributes {dimension_semantics = [#tpu.dimension_semantics<parallel>], iteration_bounds = array<i64: 2>, scalar_prefetch = 2 : i64, scratch_operands = 1 : i64, tpu.core_type = #tpu.core_type<tc>, window_params = [{transform_indices = @transform_0, window_bounds = array<i64: 1>}, {pipeline_mode = #tpu.pipeline_mode<synchronous>, transform_indices = @transform_1, window_bounds = array<i64: 1000, 32>}, {pipeline_mode = #tpu.pipeline_mode<synchronous>, transform_indices = @transform_2, window_bounds = array<i64: 2000, 32>}, {transform_indices = @transform_3, window_bounds = array<i64: 1, 512>}]} {
    %c512_i32 = arith.constant 512 : i32
    %0 = arith.muli %arg0, %c512_i32 : i32
    %1 = tpu.assume_multiple %0, 128 : i32
    %c0_i32 = arith.constant 0 : i32
    %c64_i32 = arith.constant 64 : i32
    %2 = arith.addi %c0_i32, %c64_i32 : i32
    %c1_i32 = arith.constant 1 : i32
    scf.for %arg8 = %c0_i32 to %2 step %c1_i32  : i32 {
      %c1_i32_5 = arith.constant 1 : i32
      %10 = arith.muli %arg8, %c1_i32_5 : i32
      %c0_i32_6 = arith.constant 0 : i32
      %11 = arith.addi %c0_i32_6, %10 : i32
      %c8_i32 = arith.constant 8 : i32
      %12 = arith.muli %11, %c8_i32 : i32
      %13 = tpu.assume_multiple %12, 8 : i32
      %c0_i32_7 = arith.constant 0 : i32
      %14 = arith.addi %13, %c0_i32_7 : i32
      %15 = arith.addi %1, %14 : i32
      %16 = arith.index_cast %15 : i32 to index
      %17 = memref.load %arg1[%16] : memref<1024xi32, #tpu.memory_space<smem>>
      %18 = arith.addi %1, %14 : i32
      %19 = arith.index_cast %18 : i32 to index
      %20 = memref.load %arg2[%19] : memref<1024xi32, #tpu.memory_space<smem>>
      %21 = arith.index_cast %17 : i32 to index
      %c0_8 = arith.constant 0 : index
      %22 = vector.load %arg4[%21, %c0_8] : memref<1000x32xf32, #tpu.memory_space<vmem>>, vector<1x32xf32>
      %23 = arith.index_cast %20 : i32 to index
      %c0_9 = arith.constant 0 : index
      %24 = vector.load %arg5[%23, %c0_9] : memref<2000x32xf32, #tpu.memory_space<vmem>>, vector<1x32xf32>
      %25 = arith.mulf %22, %24 : vector<1x32xf32>
      %26 = arith.index_cast %14 : i32 to index
      %c0_10 = arith.constant 0 : index
      %27 = vector.load %arg7[%26, %c0_10] : memref<512x32xf32, #tpu.memory_space<vmem>>, vector<1x32xf32>
      tpu.vector_store %arg7[%26, %c0_10], %25 {strides = array<i32>} : memref<512x32xf32, #tpu.memory_space<vmem>>, vector<1x32xf32>,
      %c1_i32_11 = arith.constant 1 : i32
      %28 = arith.addi %13, %c1_i32_11 : i32
      %29 = arith.addi %1, %28 : i32
      %30 = arith.index_cast %29 : i32 to index
      %31 = memref.load %arg1[%30] : memref<1024xi32, #tpu.memory_space<smem>>
      %32 = arith.addi %1, %28 : i32
      %33 = arith.index_cast %32 : i32 to index
      %34 = memref.load %arg2[%33] : memref<1024xi32, #tpu.memory_space<smem>>
      %35 = arith.index_cast %31 : i32 to index
      %c0_12 = arith.constant 0 : index
      %36 = vector.load %arg4[%35, %c0_12] : memref<1000x32xf32, #tpu.memory_space<vmem>>, vector<1x32xf32>
      %37 = arith.index_cast %34 : i32 to index
      %c0_13 = arith.constant 0 : index
      %38 = vector.load %arg5[%37, %c0_13] : memref<2000x32xf32, #tpu.memory_space<vmem>>, vector<1x32xf32>
      %39 = arith.mulf %36, %38 : vector<1x32xf32>
      %40 = arith.index_cast %28 : i32 to index
      %c0_14 = arith.constant 0 : index
      %41 = vector.load %arg7[%40, %c0_14] : memref<512x32xf32, #tpu.memory_space<vmem>>, vector<1x32xf32>
      tpu.vector_store %arg7[%40, %c0_14], %39 {strides = array<i32>} : memref<512x32xf32, #tpu.memory_space<vmem>>, vector<1x32xf32>,
      %c2_i32 = arith.constant 2 : i32
      %42 = arith.addi %13, %c2_i32 : i32
      %43 = arith.addi %1, %42 : i32
      %44 = arith.index_cast %43 : i32 to index
      %45 = memref.load %arg1[%44] : memref<1024xi32, #tpu.memory_space<smem>>
      %46 = arith.addi %1, %42 : i32
      %47 = arith.index_cast %46 : i32 to index
      %48 = memref.load %arg2[%47] : memref<1024xi32, #tpu.memory_space<smem>>
      %49 = arith.index_cast %45 : i32 to index
      %c0_15 = arith.constant 0 : index
      %50 = vector.load %arg4[%49, %c0_15] : memref<1000x32xf32, #tpu.memory_space<vmem>>, vector<1x32xf32>
      %51 = arith.index_cast %48 : i32 to index
      %c0_16 = arith.constant 0 : index
      %52 = vector.load %arg5[%51, %c0_16] : memref<2000x32xf32, #tpu.memory_space<vmem>>, vector<1x32xf32>
      %53 = arith.mulf %50, %52 : vector<1x32xf32>
      %54 = arith.index_cast %42 : i32 to index
      %c0_17 = arith.constant 0 : index
      %55 = vector.load %arg7[%54, %c0_17] : memref<512x32xf32, #tpu.memory_space<vmem>>, vector<1x32xf32>
      tpu.vector_store %arg7[%54, %c0_17], %53 {strides = array<i32>} : memref<512x32xf32, #tpu.memory_space<vmem>>, vector<1x32xf32>,
      %c3_i32 = arith.constant 3 : i32
      %56 = arith.addi %13, %c3_i32 : i32
      %57 = arith.addi %1, %56 : i32
      %58 = arith.index_cast %57 : i32 to index
      %59 = memref.load %arg1[%58] : memref<1024xi32, #tpu.memory_space<smem>>
      %60 = arith.addi %1, %56 : i32
      %61 = arith.index_cast %60 : i32 to index
      %62 = memref.load %arg2[%61] : memref<1024xi32, #tpu.memory_space<smem>>
      %63 = arith.index_cast %59 : i32 to index
      %c0_18 = arith.constant 0 : index
      %64 = vector.load %arg4[%63, %c0_18] : memref<1000x32xf32, #tpu.memory_space<vmem>>, vector<1x32xf32>
      %65 = arith.index_cast %62 : i32 to index
      %c0_19 = arith.constant 0 : index
      %66 = vector.load %arg5[%65, %c0_19] : memref<2000x32xf32, #tpu.memory_space<vmem>>, vector<1x32xf32>
      %67 = arith.mulf %64, %66 : vector<1x32xf32>
      %68 = arith.index_cast %56 : i32 to index
      %c0_20 = arith.constant 0 : index
      %69 = vector.load %arg7[%68, %c0_20] : memref<512x32xf32, #tpu.memory_space<vmem>>, vector<1x32xf32>
      tpu.vector_store %arg7[%68, %c0_20], %67 {strides = array<i32>} : memref<512x32xf32, #tpu.memory_space<vmem>>, vector<1x32xf32>,
      %c4_i32 = arith.constant 4 : i32
      %70 = arith.addi %13, %c4_i32 : i32
      %71 = arith.addi %1, %70 : i32
      %72 = arith.index_cast %71 : i32 to index
      %73 = memref.load %arg1[%72] : memref<1024xi32, #tpu.memory_space<smem>>
      %74 = arith.addi %1, %70 : i32
      %75 = arith.index_cast %74 : i32 to index
      %76 = memref.load %arg2[%75] : memref<1024xi32, #tpu.memory_space<smem>>
      %77 = arith.index_cast %73 : i32 to index
      %c0_21 = arith.constant 0 : index
      %78 = vector.load %arg4[%77, %c0_21] : memref<1000x32xf32, #tpu.memory_space<vmem>>, vector<1x32xf32>
      %79 = arith.index_cast %76 : i32 to index
      %c0_22 = arith.constant 0 : index
      %80 = vector.load %arg5[%79, %c0_22] : memref<2000x32xf32, #tpu.memory_space<vmem>>, vector<1x32xf32>
      %81 = arith.mulf %78, %80 : vector<1x32xf32>
      %82 = arith.index_cast %70 : i32 to index
      %c0_23 = arith.constant 0 : index
      %83 = vector.load %arg7[%82, %c0_23] : memref<512x32xf32, #tpu.memory_space<vmem>>, vector<1x32xf32>
      tpu.vector_store %arg7[%82, %c0_23], %81 {strides = array<i32>} : memref<512x32xf32, #tpu.memory_space<vmem>>, vector<1x32xf32>,
      %c5_i32 = arith.constant 5 : i32
      %84 = arith.addi %13, %c5_i32 : i32
      %85 = arith.addi %1, %84 : i32
      %86 = arith.index_cast %85 : i32 to index
      %87 = memref.load %arg1[%86] : memref<1024xi32, #tpu.memory_space<smem>>
      %88 = arith.addi %1, %84 : i32
      %89 = arith.index_cast %88 : i32 to index
      %90 = memref.load %arg2[%89] : memref<1024xi32, #tpu.memory_space<smem>>
      %91 = arith.index_cast %87 : i32 to index
      %c0_24 = arith.constant 0 : index
      %92 = vector.load %arg4[%91, %c0_24] : memref<1000x32xf32, #tpu.memory_space<vmem>>, vector<1x32xf32>
      %93 = arith.index_cast %90 : i32 to index
      %c0_25 = arith.constant 0 : index
      %94 = vector.load %arg5[%93, %c0_25] : memref<2000x32xf32, #tpu.memory_space<vmem>>, vector<1x32xf32>
      %95 = arith.mulf %92, %94 : vector<1x32xf32>
      %96 = arith.index_cast %84 : i32 to index
      %c0_26 = arith.constant 0 : index
      %97 = vector.load %arg7[%96, %c0_26] : memref<512x32xf32, #tpu.memory_space<vmem>>, vector<1x32xf32>
      tpu.vector_store %arg7[%96, %c0_26], %95 {strides = array<i32>} : memref<512x32xf32, #tpu.memory_space<vmem>>, vector<1x32xf32>,
      %c6_i32 = arith.constant 6 : i32
      %98 = arith.addi %13, %c6_i32 : i32
      %99 = arith.addi %1, %98 : i32
      %100 = arith.index_cast %99 : i32 to index
      %101 = memref.load %arg1[%100] : memref<1024xi32, #tpu.memory_space<smem>>
      %102 = arith.addi %1, %98 : i32
      %103 = arith.index_cast %102 : i32 to index
      %104 = memref.load %arg2[%103] : memref<1024xi32, #tpu.memory_space<smem>>
      %105 = arith.index_cast %101 : i32 to index
      %c0_27 = arith.constant 0 : index
      %106 = vector.load %arg4[%105, %c0_27] : memref<1000x32xf32, #tpu.memory_space<vmem>>, vector<1x32xf32>
      %107 = arith.index_cast %104 : i32 to index
      %c0_28 = arith.constant 0 : index
      %108 = vector.load %arg5[%107, %c0_28] : memref<2000x32xf32, #tpu.memory_space<vmem>>, vector<1x32xf32>
      %109 = arith.mulf %106, %108 : vector<1x32xf32>
      %110 = arith.index_cast %98 : i32 to index
      %c0_29 = arith.constant 0 : index
      %111 = vector.load %arg7[%110, %c0_29] : memref<512x32xf32, #tpu.memory_space<vmem>>, vector<1x32xf32>
      tpu.vector_store %arg7[%110, %c0_29], %109 {strides = array<i32>} : memref<512x32xf32, #tpu.memory_space<vmem>>, vector<1x32xf32>,
      %c7_i32 = arith.constant 7 : i32
      %112 = arith.addi %13, %c7_i32 : i32
      %113 = arith.addi %1, %112 : i32
      %114 = arith.index_cast %113 : i32 to index
      %115 = memref.load %arg1[%114] : memref<1024xi32, #tpu.memory_space<smem>>
      %116 = arith.addi %1, %112 : i32
      %117 = arith.index_cast %116 : i32 to index
      %118 = memref.load %arg2[%117] : memref<1024xi32, #tpu.memory_space<smem>>
      %119 = arith.index_cast %115 : i32 to index
      %c0_30 = arith.constant 0 : index
      %120 = vector.load %arg4[%119, %c0_30] : memref<1000x32xf32, #tpu.memory_space<vmem>>, vector<1x32xf32>
      %121 = arith.index_cast %118 : i32 to index
      %c0_31 = arith.constant 0 : index
      %122 = vector.load %arg5[%121, %c0_31] : memref<2000x32xf32, #tpu.memory_space<vmem>>, vector<1x32xf32>
      %123 = arith.mulf %120, %122 : vector<1x32xf32>
      %124 = arith.index_cast %112 : i32 to index
      %c0_32 = arith.constant 0 : index
      %125 = vector.load %arg7[%124, %c0_32] : memref<512x32xf32, #tpu.memory_space<vmem>>, vector<1x32xf32>
      tpu.vector_store %arg7[%124, %c0_32], %123 {strides = array<i32>} : memref<512x32xf32, #tpu.memory_space<vmem>>, vector<1x32xf32>,
    }
    %c64_i32_0 = arith.constant 64 : i32
    %c0 = arith.constant 0 : index
    %c0_1 = arith.constant 0 : index
    %3 = vector.load %arg7[%c0, %c0_1] : memref<512x32xf32, #tpu.memory_space<vmem>>, vector<512x32xf32>
    %cst = arith.constant dense<0.000000e+00> : vector<512xf32>
    %4 = vector.multi_reduction <add>, %3, %cst [1] : vector<512x32xf32> to vector<512xf32>
    %c0_2 = arith.constant 0 : index
    %5 = memref.load %arg3[%c0_2] : memref<1xf32, #tpu.memory_space<smem>>
    %6 = vector.broadcast %5 : f32 to vector<512xf32>
    %7 = arith.addf %4, %6 : vector<512xf32>
    %8 = vector.shape_cast %7 : vector<512xf32> to vector<1x512xf32>
    %c0_3 = arith.constant 0 : index
    %c0_4 = arith.constant 0 : index
    %9 = vector.load %arg6[%c0_3, %c0_4] : memref<1x512xf32, #tpu.memory_space<vmem>>, vector<1x512xf32>
    tpu.vector_store %arg6[%c0_3, %c0_4], %8 {strides = array<i32>} : memref<1x512xf32, #tpu.memory_space<vmem>>, vector<1x512xf32>,
    return
  }
  func.func @transform_0(%arg0: i32, %arg1: memref<1024xi32, #tpu.memory_space<smem>>, %arg2: memref<1024xi32, #tpu.memory_space<smem>>) -> i32 {
    %c0_i32 = arith.constant 0 : i32
    %c0_i32_0 = arith.constant 0 : i32
    return %c0_i32 : i32
  }
  func.func @transform_1(%arg0: i32, %arg1: memref<1024xi32, #tpu.memory_space<smem>>, %arg2: memref<1024xi32, #tpu.memory_space<smem>>) -> (i32, i32) {
    %c0_i32 = arith.constant 0 : i32
    %c0_i32_0 = arith.constant 0 : i32
    %c0_i32_1 = arith.constant 0 : i32
    return %c0_i32, %c0_i32_0 : i32, i32
  }
  func.func @transform_2(%arg0: i32, %arg1: memref<1024xi32, #tpu.memory_space<smem>>, %arg2: memref<1024xi32, #tpu.memory_space<smem>>) -> (i32, i32) {
    %c0_i32 = arith.constant 0 : i32
    %c0_i32_0 = arith.constant 0 : i32
    %c0_i32_1 = arith.constant 0 : i32
    return %c0_i32, %c0_i32_0 : i32, i32
  }
  func.func @transform_3(%arg0: i32, %arg1: memref<1024xi32, #tpu.memory_space<smem>>, %arg2: memref<1024xi32, #tpu.memory_space<smem>>) -> (i32, i32) {
    %c0_i32 = arith.constant 0 : i32
    %c0_i32_0 = arith.constant 0 : i32
    return %c0_i32, %arg0 : i32, i32
  }
}

</mosaic_0001>

<llo_original>
// kernel: gmf_forward.1
$region0: #{gmf_forward.1}
  #allocation0 [shape = 'u32[]', space=smem, size = 0x4, offset = 0x4, fixed_abs, tag = 'smem constant byte address 0x4 - core index']
  #allocation1 [shape = 'u32[72,128]{1,0:T(1,128)}', space=vmem, size = 0x9000, scoped, tag = 'internal scratch']
  #allocation2 [shape = 'f32[512,32]{1,0:T(8,128)}', space=vmem, size = 0x40000, scoped, tag = 'scratch operand']
  #allocation3 [shape = 's32[1]{0}', space=sflag, size = 0x4, scoped, tag = 'scoped memory for gmf_forward.1']
  #allocation4 [shape = 'u8[4096]{0}', space=smem, size = 0x1000, scoped, tag = 'prefetched SMEM operand 0']
  #allocation5 [shape = 'u8[4096]{0}', space=smem, size = 0x1000, scoped, tag = 'prefetched SMEM operand 1']
  #allocation6 [shape = 'f32[1]{0:T(128)S(6)}', space=smem, size = 0x200, scoped, tag = 'scoped memory for gmf_forward.1']
  %s0 = inlined_call_operand.vmem [shape: s32[1024], index: 0, kind: input, shape index: {}]
  %s1 = inlined_call_operand.vmem [shape: s32[1024], index: 1, kind: input, shape index: {}]
  %s2 = inlined_call_operand.<no memory space> [shape: f32[1], index: 2, kind: input, shape index: {}]
  %s3 = inlined_call_operand.vmem [shape: f32[1000,32], index: 3, kind: input, shape index: {}]
  %s4 = inlined_call_operand.vmem [shape: f32[2000,32], index: 4, kind: input, shape index: {}]
  %s5 = inlined_call_operand.hbm [shape: f32[1,1024], index: 5, kind: output, shape index: {}]
  %s6 = sld [smem:[#allocation0]]
  $region52: #{gmf_forward.1} parent=0
    _
  %s8 = ssub.s32 1, %s6
  %s9 = scalar_select 0, %s8, %s6
  %s11 = sshll.u32 %s0, 4
  %s12 = int_to_ptr.vmem [resolvable:$true] %s11
  %14 = dma.vmem_to_smem %s12, 128, [#allocation4], [#allocation3]
  %s16 = sshll.u32 %s1, 4
  %s17 = int_to_ptr.vmem [resolvable:$true] %s16
  %19 = dma.vmem_to_smem %s17, 128, [#allocation5], [#allocation3]
  %20 = sst [smem:[#allocation6]] %s2
  %22 = dma.done [#allocation3], 256
  %23 = sfence
  $region1: #{gmf_forward.1} parent=0
    #allocation7 [shape = 'u8[4096]{0}', space=vmem, size = 0x1000, scoped, tag = 'output window, operand 0']
    #allocation8 [shape = 's32[2]{0}', space=sflag, size = 0x8, scoped, tag = 'scoped memory for gmf_forward.1']
    %24 = vsyncpa [#allocation8], 0
    %s25 = scalar_lea.sflag [#allocation8], 1
    %26 = vsyncpa %s25, 0
    loop: start=0, step=1, limit=4
    $region2: #{gmf_forward.1} parent=1 // loop_pre_header
      _
    $region3: #{gmf_forward.1} parent=1 // loop_header
      %s28 = sphi 0, %s32
      %p29 = scmp.ge.s32.totalorder %s28, 4
      %s36 = sphi 0, %s36
      %s38 = sphi 0, %s36
      %s39 = sphi 0, %s38
      %s53 = sphi 0, %s39
      %s57 = sphi 0, %s57
      %s59 = sphi 0, %s57
      %s60 = sphi 0, %s59
      %s74 = sphi 0, %s60
      %s78 = sphi 0, %s78
      %s80 = sphi 0, %s78
      %s81 = sphi 0, %s80
      %s95 = sphi 0, %s81
      %s101 = sphi 0, %s103
      %s104 = sphi 0, %s101
      %s105 = sphi 0, %s104
      %s121 = sphi 0, %s105
    $region4: #{gmf_forward.1} parent=1 // loop_header_branch
      %31 = sbr.rel (%p29) target = $region8
    $region5: #{gmf_forward.1} parent=1 // loop_body
      %s33 = ssub.s32 %s28, 1
      %s34 = ssub.s32 %s28, 2
      %s35 = sadd.s32 %s28, 1
      %s37 = sadd.s32 %s36, 1
      %p40 = scmp.eq.s32.totalorder %s28, 1
      %p41 = scmp.ne.s32.totalorder %s36, %s38
      %p42 = scmp.eq.s32.totalorder %s28, 0
      %p43 = por %p41, %p42
      %p44 = scmp.ne.s32.totalorder %s36, %s38
      %p45 = scmp.eq.s32.totalorder %s33, 1
      %p46 = por %p44, %p45
      %p47 = scmp.ne.s32.totalorder %s38, %s39
      %p48 = scmp.eq.s32.totalorder %s33, 0
      %p49 = por %p47, %p48
      %p50 = scmp.ne.s32.totalorder %s38, %s39
      %p51 = scmp.eq.s32.totalorder %s34, 1
      %p52 = por %p50, %p51
      %p54 = scmp.ne.s32.totalorder %s39, %s53
      %p55 = scmp.eq.s32.totalorder %s34, 0
      %p56 = por %p54, %p55
      %s58 = sadd.s32 %s57, 1
      %p61 = scmp.eq.s32.totalorder %s28, 1
      %p62 = scmp.ne.s32.totalorder %s57, %s59
      %p63 = scmp.eq.s32.totalorder %s28, 0
      %p64 = por %p62, %p63
      %p65 = scmp.ne.s32.totalorder %s57, %s59
      %p66 = scmp.eq.s32.totalorder %s33, 1
      %p67 = por %p65, %p66
      %p68 = scmp.ne.s32.totalorder %s59, %s60
      %p69 = scmp.eq.s32.totalorder %s33, 0
      %p70 = por %p68, %p69
      %p71 = scmp.ne.s32.totalorder %s59, %s60
      %p72 = scmp.eq.s32.totalorder %s34, 1
      %p73 = por %p71, %p72
      %p75 = scmp.ne.s32.totalorder %s60, %s74
      %p76 = scmp.eq.s32.totalorder %s34, 0
      %p77 = por %p75, %p76
      %s79 = sadd.s32 %s78, 1
      %p82 = scmp.eq.s32.totalorder %s28, 1
      %p83 = scmp.ne.s32.totalorder %s78, %s80
      %p84 = scmp.eq.s32.totalorder %s28, 0
      %p85 = por %p83, %p84
      %p86 = scmp.ne.s32.totalorder %s78, %s80
      %p87 = scmp.eq.s32.totalorder %s33, 1
      %p88 = por %p86, %p87
      %p89 = scmp.ne.s32.totalorder %s80, %s81
      %p90 = scmp.eq.s32.totalorder %s33, 0
      %p91 = por %p89, %p90
      %p92 = scmp.ne.s32.totalorder %s80, %s81
      %p93 = scmp.eq.s32.totalorder %s34, 1
      %p94 = por %p92, %p93
      %p96 = scmp.ne.s32.totalorder %s81, %s95
      %p97 = scmp.eq.s32.totalorder %s34, 0
      %p98 = por %p96, %p97
      %s99 = ssub.s32 %s28, %s35
      %p100 = scmp.eq.s32.totalorder %s99, 0
      %s102 = sadd.s32 %s101, 1
      %s103 = scalar_select %p100, %s101, %s102
      %p106 = pneg %p100
      %p107 = scmp.eq.s32.totalorder %s28, 1
      %p108 = por %p106, %p107
      %p109 = scmp.ne.s32.totalorder %s101, %s104
      %p110 = scmp.eq.s32.totalorder %s28, 0
      %p111 = por %p109, %p110
      %p112 = scmp.ne.s32.totalorder %s101, %s104
      %p113 = scmp.eq.s32.totalorder %s33, 1
      %p114 = por %p112, %p113
      %p115 = scmp.ne.s32.totalorder %s104, %s105
      %p116 = scmp.eq.s32.totalorder %s33, 0
      %p117 = por %p115, %p116
      %p118 = scmp.ne.s32.totalorder %s104, %s105
      %p119 = scmp.eq.s32.totalorder %s34, 1
      %p120 = por %p118, %p119
      %p122 = scmp.ne.s32.totalorder %s105, %s121
      %p123 = scmp.eq.s32.totalorder %s34, 0
      %p124 = por %p122, %p123
      %p125 = scmp.le.s32.totalorder 1, %s28
      %p126 = scmp.lt.s32.totalorder %s28, 3
      %p127 = pnand %p125, %p126
      %p128 = pneg %p127
      // Predicated region
      $region9: #{gmf_forward.1} parent=5 // pred_check
        _
      $region10: #{gmf_forward.1} parent=5 // pred_check_branch
        %130 = sbr.rel (%p127) target = $region12
      $region11: #{gmf_forward.1} parent=5 // pred_region
        %s131 = ssub.s32 %s28, 1
        // Predicated region
        $region13: #{gmf_forward.1} parent=11 // pred_check
          %p132 = pneg %p49
        $region14: #{gmf_forward.1} parent=11 // pred_check_branch
          %134 = sbr.rel (%p132) target = $region16
        $region15: #{gmf_forward.1} parent=11 // pred_region
          _
        $region16: #{gmf_forward.1} parent=11 // pred_fallthru
          _
        // Predicated region
        $region17: #{gmf_forward.1} parent=11 // pred_check
          %p135 = pneg %p70
        $region18: #{gmf_forward.1} parent=11 // pred_check_branch
          %137 = sbr.rel (%p135) target = $region20
        $region19: #{gmf_forward.1} parent=11 // pred_region
          _
        $region20: #{gmf_forward.1} parent=11 // pred_fallthru
          _
        // Predicated region
        $region21: #{gmf_forward.1} parent=11 // pred_check
          %p138 = pneg %p91
        $region22: #{gmf_forward.1} parent=11 // pred_check_branch
          %140 = sbr.rel (%p138) target = $region24
        $region23: #{gmf_forward.1} parent=11 // pred_region
          _
        $region24: #{gmf_forward.1} parent=11 // pred_fallthru
          _
      $region12: #{gmf_forward.1} parent=5 // pred_fallthru
        _
      %p141 = scmp.lt.s32.totalorder %s28, 2
      // Predicated region
      $region25: #{gmf_forward.1} parent=5 // pred_check
        %p142 = pneg %p141
      $region26: #{gmf_forward.1} parent=5 // pred_check_branch
        %144 = sbr.rel (%p142) target = $region28
      $region27: #{gmf_forward.1} parent=5 // pred_region
        _
      $region28: #{gmf_forward.1} parent=5 // pred_fallthru
        _
      %p145 = scmp.le.s32.totalorder 1, %s28
      %p146 = scmp.lt.s32.totalorder %s28, 3
      %p147 = pnand %p145, %p146
      %p148 = pneg %p147
      // Predicated region
      $region29: #{gmf_forward.1} parent=5 // pred_check
        _
      $region30: #{gmf_forward.1} parent=5 // pred_check_branch
        %150 = sbr.rel (%p147) target = $region32
      $region31: #{gmf_forward.1} parent=5 // pred_region
        %s151 = ssub.s32 %s28, 1
        %p152 = pneg %p49
        %p153 = pneg %p46
        %p154 = pneg %p70
        %p155 = pneg %p67
        %p156 = pneg %p91
        %p157 = pneg %p88
        %p158 = pneg %p117
        %p159 = pneg %p114
        %s160 = sand.u32 %s104, 1
        %s161 = scalar_lea.sflag [#allocation8], %s160
        %s162 = sand.u32 %s104, 1
        %s163 = smul.addr %s162, 4
        %s164 = scalar_lea.vmem [#allocation7], %s163
        %s165 = smul.u32 4, %s33
        %s166 = smul.u32 %s33, 512
        loop: start=0, step=1, limit=64
        $region33: #{gmf_forward.1} parent=31 // loop_pre_header
          _
        $region34: #{gmf_forward.1} parent=31 // loop_header
          %s168 = sphi 0, %s172
          %p169 = scmp.ge.s32.totalorder %s168, 64
        $region35: #{gmf_forward.1} parent=31 // loop_header_branch
          %171 = sbr.rel (%p169) target = $region39
        $region36: #{gmf_forward.1} parent=31 // loop_body
          %s173 = smul.u32 %s168, 8
          %s174 = sadd.s32 %s166, %s173
          %s175 = sld [smem:[#allocation4 + %s174]]
          %s176 = sld [smem:[#allocation5 + %s174]]
          %s177 = scalar_lea.vmem %s3, %s175
          %v178 = vld [vmem:[%s177] sm:$0x1]
          %s179 = scalar_lea.vmem %s4, %s176
          %v180 = vld [vmem:[%s179] sm:$0x1]
          %v181 = vmul.f32 %v178, %v180
          %s182 = scalar_lea.vmem [#allocation2], %s173
          %vm183 = vcmask 253952
          %184 = vst.msk [vmem:[%s182] sm:$0x1] %vm183, %v181
          %s185 = sadd.s32 %s173, 1
          %s186 = sadd.s32 %s166, %s185
          %s187 = sld [smem:[#allocation4 + %s186]]
          %s188 = sld [smem:[#allocation5 + %s186]]
          %s189 = scalar_lea.vmem %s3, %s187
          %v190 = vld [vmem:[%s189] sm:$0x1]
          %s191 = scalar_lea.vmem %s4, %s188
          %v192 = vld [vmem:[%s191] sm:$0x1]
          %v193 = vmul.f32 %v190, %v192
          %s194 = scalar_lea.vmem [#allocation2], %s185
          %195 = vst.msk [vmem:[%s194] sm:$0x1] %vm183, %v193
          %s196 = sadd.s32 %s173, 2
          %s197 = sadd.s32 %s166, %s196
          %s198 = sld [smem:[#allocation4 + %s197]]
          %s199 = sld [smem:[#allocation5 + %s197]]
          %s200 = scalar_lea.vmem %s3, %s198
          %v201 = vld [vmem:[%s200] sm:$0x1]
          %s202 = scalar_lea.vmem %s4, %s199
          %v203 = vld [vmem:[%s202] sm:$0x1]
          %v204 = vmul.f32 %v201, %v203
          %s205 = scalar_lea.vmem [#allocation2], %s196
          %206 = vst.msk [vmem:[%s205] sm:$0x1] %vm183, %v204
          %s207 = sadd.s32 %s173, 3
          %s208 = sadd.s32 %s166, %s207
          %s209 = sld [smem:[#allocation4 + %s208]]
          %s210 = sld [smem:[#allocation5 + %s208]]
          %s211 = scalar_lea.vmem %s3, %s209
          %v212 = vld [vmem:[%s211] sm:$0x1]
          %s213 = scalar_lea.vmem %s4, %s210
          %v214 = vld [vmem:[%s213] sm:$0x1]
          %v215 = vmul.f32 %v212, %v214
          %s216 = scalar_lea.vmem [#allocation2], %s207
          %217 = vst.msk [vmem:[%s216] sm:$0x1] %vm183, %v215
          %s218 = sadd.s32 %s173, 4
          %s219 = sadd.s32 %s166, %s218
          %s220 = sld [smem:[#allocation4 + %s219]]
          %s221 = sld [smem:[#allocation5 + %s219]]
          %s222 = scalar_lea.vmem %s3, %s220
          %v223 = vld [vmem:[%s222] sm:$0x1]
          %s224 = scalar_lea.vmem %s4, %s221
          %v225 = vld [vmem:[%s224] sm:$0x1]
          %v226 = vmul.f32 %v223, %v225
          %s227 = scalar_lea.vmem [#allocation2], %s218
          %228 = vst.msk [vmem:[%s227] sm:$0x1] %vm183, %v226
          %s229 = sadd.s32 %s173, 5
          %s230 = sadd.s32 %s166, %s229
          %s231 = sld [smem:[#allocation4 + %s230]]
          %s232 = sld [smem:[#allocation5 + %s230]]
          %s233 = scalar_lea.vmem %s3, %s231
          %v234 = vld [vmem:[%s233] sm:$0x1]
          %s235 = scalar_lea.vmem %s4, %s232
          %v236 = vld [vmem:[%s235] sm:$0x1]
          %v237 = vmul.f32 %v234, %v236
          %s238 = scalar_lea.vmem [#allocation2], %s229
          %239 = vst.msk [vmem:[%s238] sm:$0x1] %vm183, %v237
          %s240 = sadd.s32 %s173, 6
          %s241 = sadd.s32 %s166, %s240
          %s242 = sld [smem:[#allocation4 + %s241]]
          %s243 = sld [smem:[#allocation5 + %s241]]
          %s244 = scalar_lea.vmem %s3, %s242
          %v245 = vld [vmem:[%s244] sm:$0x1]
          %s246 = scalar_lea.vmem %s4, %s243
          %v247 = vld [vmem:[%s246] sm:$0x1]
          %v248 = vmul.f32 %v245, %v247
          %s249 = scalar_lea.vmem [#allocation2], %s240
          %250 = vst.msk [vmem:[%s249] sm:$0x1] %vm183, %v248
          %s251 = sadd.s32 %s173, 7
          %s252 = sadd.s32 %s166, %s251
          %s253 = sld [smem:[#allocation4 + %s252]]
          %s254 = sld [smem:[#allocation5 + %s252]]
          %s255 = scalar_lea.vmem %s3, %s253
          %v256 = vld [vmem:[%s255] sm:$0x1]
          %s257 = scalar_lea.vmem %s4, %s254
          %v258 = vld [vmem:[%s257] sm:$0x1]
          %v259 = vmul.f32 %v256, %v258
          %s260 = scalar_lea.vmem [#allocation2], %s251
          %261 = vst.msk [vmem:[%s260] sm:$0x1] %vm183, %v259
        $region37: #{gmf_forward.1} parent=31 // loop_footer
          %s172 = sadd.s32 1, %s168
        $region38: #{gmf_forward.1} parent=31 // loop_footer_branch
          %167 = sbr.rel target = $region34
        $region39: #{gmf_forward.1} parent=31 // loop_exit
          _
        %v262 = vld [vmem:[#allocation2] sm:$0xff]
        %v263 = vld [vmem:[#allocation2 + $0x8] sm:$0xff]
        %v264 = vld [vmem:[#allocation2 + $0x10] sm:$0xff]
        %v265 = vld [vmem:[#allocation2 + $0x18] sm:$0xff]
        %v266 = vld [vmem:[#allocation2 + $0x20] sm:$0xff]
        %v267 = vld [vmem:[#allocation2 + $0x28] sm:$0xff]
        %v268 = vld [vmem:[#allocation2 + $0x30] sm:$0xff]
        %v269 = vld [vmem:[#allocation2 + $0x38] sm:$0xff]
        %v270 = vld [vmem:[#allocation2 + $0x40] sm:$0xff]
        %v271 = vld [vmem:[#allocation2 + $0x48] sm:$0xff]
        %v272 = vld [vmem:[#allocation2 + $0x50] sm:$0xff]
        %v273 = vld [vmem:[#allocation2 + $0x58] sm:$0xff]
        %v274 = vld [vmem:[#allocation2 + $0x60] sm:$0xff]
        %v275 = vld [vmem:[#allocation2 + $0x68] sm:$0xff]
        %v276 = vld [vmem:[#allocation2 + $0x70] sm:$0xff]
        %v277 = vld [vmem:[#allocation2 + $0x78] sm:$0xff]
        %v278 = vld [vmem:[#allocation2 + $0x80] sm:$0xff]
        %v279 = vld [vmem:[#allocation2 + $0x88] sm:$0xff]
        %v280 = vld [vmem:[#allocation2 + $0x90] sm:$0xff]
        %v281 = vld [vmem:[#allocation2 + $0x98] sm:$0xff]
        %v282 = vld [vmem:[#allocation2 + $0xa0] sm:$0xff]
        %v283 = vld [vmem:[#allocation2 + $0xa8] sm:$0xff]
        %v284 = vld [vmem:[#allocation2 + $0xb0] sm:$0xff]
        %v285 = vld [vmem:[#allocation2 + $0xb8] sm:$0xff]
        %v286 = vld [vmem:[#allocation2 + $0xc0] sm:$0xff]
        %v287 = vld [vmem:[#allocation2 + $0xc8] sm:$0xff]
        %v288 = vld [vmem:[#allocation2 + $0xd0] sm:$0xff]
        %v289 = vld [vmem:[#allocation2 + $0xd8] sm:$0xff]
        %v290 = vld [vmem:[#allocation2 + $0xe0] sm:$0xff]
        %v291 = vld [vmem:[#allocation2 + $0xe8] sm:$0xff]
        %v292 = vld [vmem:[#allocation2 + $0xf0] sm:$0xff]
        %v293 = vld [vmem:[#allocation2 + $0xf8] sm:$0xff]
        %v294 = vld [vmem:[#allocation2 + $0x100] sm:$0xff]
        %v295 = vld [vmem:[#allocation2 + $0x108] sm:$0xff]
        %v296 = vld [vmem:[#allocation2 + $0x110] sm:$0xff]
        %v297 = vld [vmem:[#allocation2 + $0x118] sm:$0xff]
        %v298 = vld [vmem:[#allocation2 + $0x120] sm:$0xff]
        %v299 = vld [vmem:[#allocation2 + $0x128] sm:$0xff]
        %v300 = vld [vmem:[#allocation2 + $0x130] sm:$0xff]
        %v301 = vld [vmem:[#allocation2 + $0x138] sm:$0xff]
        %v302 = vld [vmem:[#allocation2 + $0x140] sm:$0xff]
        %v303 = vld [vmem:[#allocation2 + $0x148] sm:$0xff]
        %v304 = vld [vmem:[#allocation2 + $0x150] sm:$0xff]
        %v305 = vld [vmem:[#allocation2 + $0x158] sm:$0xff]
        %v306 = vld [vmem:[#allocation2 + $0x160] sm:$0xff]
        %v307 = vld [vmem:[#allocation2 + $0x168] sm:$0xff]
        %v308 = vld [vmem:[#allocation2 + $0x170] sm:$0xff]
        %v309 = vld [vmem:[#allocation2 + $0x178] sm:$0xff]
        %v310 = vld [vmem:[#allocation2 + $0x180] sm:$0xff]
        %v311 = vld [vmem:[#allocation2 + $0x188] sm:$0xff]
        %v312 = vld [vmem:[#allocation2 + $0x190] sm:$0xff]
        %v313 = vld [vmem:[#allocation2 + $0x198] sm:$0xff]
        %v314 = vld [vmem:[#allocation2 + $0x1a0] sm:$0xff]
        %v315 = vld [vmem:[#allocation2 + $0x1a8] sm:$0xff]
        %v316 = vld [vmem:[#allocation2 + $0x1b0] sm:$0xff]
        %v317 = vld [vmem:[#allocation2 + $0x1b8] sm:$0xff]
        %v318 = vld [vmem:[#allocation2 + $0x1c0] sm:$0xff]
        %v319 = vld [vmem:[#allocation2 + $0x1c8] sm:$0xff]
        %v320 = vld [vmem:[#allocation2 + $0x1d0] sm:$0xff]
        %v321 = vld [vmem:[#allocation2 + $0x1d8] sm:$0xff]
        %v322 = vld [vmem:[#allocation2 + $0x1e0] sm:$0xff]
        %v323 = vld [vmem:[#allocation2 + $0x1e8] sm:$0xff]
        %v324 = vld [vmem:[#allocation2 + $0x1f0] sm:$0xff]
        %v325 = vld [vmem:[#allocation2 + $0x1f8] sm:$0xff]
        %vm326 = vcmask 261120
        %v327 = vsel %vm326, %v262, 0.0
        %328 = vadd.xlane.f32.xlu0 %v327
        %v329 = vpop.xlane.xlu0 %328
        %v330 = vsel %vm326, %v263, 0.0
        %331 = vadd.xlane.f32.xlu0 %v330
        %v332 = vpop.xlane.xlu0 %331
        %v333 = vsel %vm326, %v264, 0.0
        %334 = vadd.xlane.f32.xlu0 %v333
        %v335 = vpop.xlane.xlu0 %334
        %v336 = vsel %vm326, %v265, 0.0
        %337 = vadd.xlane.f32.xlu0 %v336
        %v338 = vpop.xlane.xlu0 %337
        %v339 = vsel %vm326, %v266, 0.0
        %340 = vadd.xlane.f32.xlu0 %v339
        %v341 = vpop.xlane.xlu0 %340
        %v342 = vsel %vm326, %v267, 0.0
        %343 = vadd.xlane.f32.xlu0 %v342
        %v344 = vpop.xlane.xlu0 %343
        %v345 = vsel %vm326, %v268, 0.0
        %346 = vadd.xlane.f32.xlu0 %v345
        %v347 = vpop.xlane.xlu0 %346
        %v348 = vsel %vm326, %v269, 0.0
        %349 = vadd.xlane.f32.xlu0 %v348
        %v350 = vpop.xlane.xlu0 %349
        %v351 = vsel %vm326, %v270, 0.0
        %352 = vadd.xlane.f32.xlu0 %v351
        %v353 = vpop.xlane.xlu0 %352
        %v354 = vsel %vm326, %v271, 0.0
        %355 = vadd.xlane.f32.xlu0 %v354
        %v356 = vpop.xlane.xlu0 %355
        %v357 = vsel %vm326, %v272, 0.0
        %358 = vadd.xlane.f32.xlu0 %v357
        %v359 = vpop.xlane.xlu0 %358
        %v360 = vsel %vm326, %v273, 0.0
        %361 = vadd.xlane.f32.xlu0 %v360
        %v362 = vpop.xlane.xlu0 %361
        %v363 = vsel %vm326, %v274, 0.0
        %364 = vadd.xlane.f32.xlu0 %v363
        %v365 = vpop.xlane.xlu0 %364
        %v366 = vsel %vm326, %v275, 0.0
        %367 = vadd.xlane.f32.xlu0 %v366
        %v368 = vpop.xlane.xlu0 %367
        %v369 = vsel %vm326, %v276, 0.0
        %370 = vadd.xlane.f32.xlu0 %v369
        %v371 = vpop.xlane.xlu0 %370
        %v372 = vsel %vm326, %v277, 0.0
        %373 = vadd.xlane.f32.xlu0 %v372
        %v374 = vpop.xlane.xlu0 %373
        %v375 = vsel %vm326, %v278, 0.0
        %376 = vadd.xlane.f32.xlu0 %v375
        %v377 = vpop.xlane.xlu0 %376
        %v378 = vsel %vm326, %v279, 0.0
        %379 = vadd.xlane.f32.xlu0 %v378
        %v380 = vpop.xlane.xlu0 %379
        %v381 = vsel %vm326, %v280, 0.0
        %382 = vadd.xlane.f32.xlu0 %v381
        %v383 = vpop.xlane.xlu0 %382
        %v384 = vsel %vm326, %v281, 0.0
        %385 = vadd.xlane.f32.xlu0 %v384
        %v386 = vpop.xlane.xlu0 %385
        %v387 = vsel %vm326, %v282, 0.0
        %388 = vadd.xlane.f32.xlu0 %v387
        %v389 = vpop.xlane.xlu0 %388
        %v390 = vsel %vm326, %v283, 0.0
        %391 = vadd.xlane.f32.xlu0 %v390
        %v392 = vpop.xlane.xlu0 %391
        %v393 = vsel %vm326, %v284, 0.0
        %394 = vadd.xlane.f32.xlu0 %v393
        %v395 = vpop.xlane.xlu0 %394
        %v396 = vsel %vm326, %v285, 0.0
        %397 = vadd.xlane.f32.xlu0 %v396
        %v398 = vpop.xlane.xlu0 %397
        %v399 = vsel %vm326, %v286, 0.0
        %400 = vadd.xlane.f32.xlu0 %v399
        %v401 = vpop.xlane.xlu0 %400
        %v402 = vsel %vm326, %v287, 0.0
        %403 = vadd.xlane.f32.xlu0 %v402
        %v404 = vpop.xlane.xlu0 %403
        %v405 = vsel %vm326, %v288, 0.0
        %406 = vadd.xlane.f32.xlu0 %v405
        %v407 = vpop.xlane.xlu0 %406
        %v408 = vsel %vm326, %v289, 0.0
        %409 = vadd.xlane.f32.xlu0 %v408
        %v410 = vpop.xlane.xlu0 %409
        %v411 = vsel %vm326, %v290, 0.0
        %412 = vadd.xlane.f32.xlu0 %v411
        %v413 = vpop.xlane.xlu0 %412
        %v414 = vsel %vm326, %v291, 0.0
        %415 = vadd.xlane.f32.xlu0 %v414
        %v416 = vpop.xlane.xlu0 %415
        %v417 = vsel %vm326, %v292, 0.0
        %418 = vadd.xlane.f32.xlu0 %v417
        %v419 = vpop.xlane.xlu0 %418
        %v420 = vsel %vm326, %v293, 0.0
        %421 = vadd.xlane.f32.xlu0 %v420
        %v422 = vpop.xlane.xlu0 %421
        %v423 = vsel %vm326, %v294, 0.0
        %424 = vadd.xlane.f32.xlu0 %v423
        %v425 = vpop.xlane.xlu0 %424
        %v426 = vsel %vm326, %v295, 0.0
        %427 = vadd.xlane.f32.xlu0 %v426
        %v428 = vpop.xlane.xlu0 %427
        %v429 = vsel %vm326, %v296, 0.0
        %430 = vadd.xlane.f32.xlu0 %v429
        %v431 = vpop.xlane.xlu0 %430
        %v432 = vsel %vm326, %v297, 0.0
        %433 = vadd.xlane.f32.xlu0 %v432
        %v434 = vpop.xlane.xlu0 %433
        %v435 = vsel %vm326, %v298, 0.0
        %436 = vadd.xlane.f32.xlu0 %v435
        %v437 = vpop.xlane.xlu0 %436
        %v438 = vsel %vm326, %v299, 0.0
        %439 = vadd.xlane.f32.xlu0 %v438
        %v440 = vpop.xlane.xlu0 %439
        %v441 = vsel %vm326, %v300, 0.0
        %442 = vadd.xlane.f32.xlu0 %v441
        %v443 = vpop.xlane.xlu0 %442
        %v444 = vsel %vm326, %v301, 0.0
        %445 = vadd.xlane.f32.xlu0 %v444
        %v446 = vpop.xlane.xlu0 %445
        %v447 = vsel %vm326, %v302, 0.0
        %448 = vadd.xlane.f32.xlu0 %v447
        %v449 = vpop.xlane.xlu0 %448
        %v450 = vsel %vm326, %v303, 0.0
        %451 = vadd.xlane.f32.xlu0 %v450
        %v452 = vpop.xlane.xlu0 %451
        %v453 = vsel %vm326, %v304, 0.0
        %454 = vadd.xlane.f32.xlu0 %v453
        %v455 = vpop.xlane.xlu0 %454
        %v456 = vsel %vm326, %v305, 0.0
        %457 = vadd.xlane.f32.xlu0 %v456
        %v458 = vpop.xlane.xlu0 %457
        %v459 = vsel %vm326, %v306, 0.0
        %460 = vadd.xlane.f32.xlu0 %v459
        %v461 = vpop.xlane.xlu0 %460
        %v462 = vsel %vm326, %v307, 0.0
        %463 = vadd.xlane.f32.xlu0 %v462
        %v464 = vpop.xlane.xlu0 %463
        %v465 = vsel %vm326, %v308, 0.0
        %466 = vadd.xlane.f32.xlu0 %v465
        %v467 = vpop.xlane.xlu0 %466
        %v468 = vsel %vm326, %v309, 0.0
        %469 = vadd.xlane.f32.xlu0 %v468
        %v470 = vpop.xlane.xlu0 %469
        %v471 = vsel %vm326, %v310, 0.0
        %472 = vadd.xlane.f32.xlu0 %v471
        %v473 = vpop.xlane.xlu0 %472
        %v474 = vsel %vm326, %v311, 0.0
        %475 = vadd.xlane.f32.xlu0 %v474
        %v476 = vpop.xlane.xlu0 %475
        %v477 = vsel %vm326, %v312, 0.0
        %478 = vadd.xlane.f32.xlu0 %v477
        %v479 = vpop.xlane.xlu0 %478
        %v480 = vsel %vm326, %v313, 0.0
        %481 = vadd.xlane.f32.xlu0 %v480
        %v482 = vpop.xlane.xlu0 %481
        %v483 = vsel %vm326, %v314, 0.0
        %484 = vadd.xlane.f32.xlu0 %v483
        %v485 = vpop.xlane.xlu0 %484
        %v486 = vsel %vm326, %v315, 0.0
        %487 = vadd.xlane.f32.xlu0 %v486
        %v488 = vpop.xlane.xlu0 %487
        %v489 = vsel %vm326, %v316, 0.0
        %490 = vadd.xlane.f32.xlu0 %v489
        %v491 = vpop.xlane.xlu0 %490
        %v492 = vsel %vm326, %v317, 0.0
        %493 = vadd.xlane.f32.xlu0 %v492
        %v494 = vpop.xlane.xlu0 %493
        %v495 = vsel %vm326, %v318, 0.0
        %496 = vadd.xlane.f32.xlu0 %v495
        %v497 = vpop.xlane.xlu0 %496
        %v498 = vsel %vm326, %v319, 0.0
        %499 = vadd.xlane.f32.xlu0 %v498
        %v500 = vpop.xlane.xlu0 %499
        %v501 = vsel %vm326, %v320, 0.0
        %502 = vadd.xlane.f32.xlu0 %v501
        %v503 = vpop.xlane.xlu0 %502
        %v504 = vsel %vm326, %v321, 0.0
        %505 = vadd.xlane.f32.xlu0 %v504
        %v506 = vpop.xlane.xlu0 %505
        %v507 = vsel %vm326, %v322, 0.0
        %508 = vadd.xlane.f32.xlu0 %v507
        %v509 = vpop.xlane.xlu0 %508
        %v510 = vsel %vm326, %v323, 0.0
        %511 = vadd.xlane.f32.xlu0 %v510
        %v512 = vpop.xlane.xlu0 %511
        %v513 = vsel %vm326, %v324, 0.0
        %514 = vadd.xlane.f32.xlu0 %v513
        %v515 = vpop.xlane.xlu0 %514
        %v516 = vsel %vm326, %v325, 0.0
        %517 = vadd.xlane.f32.xlu0 %v516
        %v518 = vpop.xlane.xlu0 %517
        %s519 = sld [smem:[#allocation6]]
        %v520 = vstv %s519
        %v521 = vadd.f32 %v329, %v520
        %v522 = vadd.f32 %v332, %v520
        %v523 = vadd.f32 %v335, %v520
        %v524 = vadd.f32 %v338, %v520
        %v525 = vadd.f32 %v341, %v520
        %v526 = vadd.f32 %v344, %v520
        %v527 = vadd.f32 %v347, %v520
        %v528 = vadd.f32 %v350, %v520
        %v529 = vadd.f32 %v353, %v520
        %v530 = vadd.f32 %v356, %v520
        %v531 = vadd.f32 %v359, %v520
        %v532 = vadd.f32 %v362, %v520
        %v533 = vadd.f32 %v365, %v520
        %v534 = vadd.f32 %v368, %v520
        %v535 = vadd.f32 %v371, %v520
        %v536 = vadd.f32 %v374, %v520
        %v537 = vadd.f32 %v377, %v520
        %v538 = vadd.f32 %v380, %v520
        %v539 = vadd.f32 %v383, %v520
        %v540 = vadd.f32 %v386, %v520
        %v541 = vadd.f32 %v389, %v520
        %v542 = vadd.f32 %v392, %v520
        %v543 = vadd.f32 %v395, %v520
        %v544 = vadd.f32 %v398, %v520
        %v545 = vadd.f32 %v401, %v520
        %v546 = vadd.f32 %v404, %v520
        %v547 = vadd.f32 %v407, %v520
        %v548 = vadd.f32 %v410, %v520
        %v549 = vadd.f32 %v413, %v520
        %v550 = vadd.f32 %v416, %v520
        %v551 = vadd.f32 %v419, %v520
        %v552 = vadd.f32 %v422, %v520
        %v553 = vadd.f32 %v425, %v520
        %v554 = vadd.f32 %v428, %v520
        %v555 = vadd.f32 %v431, %v520
        %v556 = vadd.f32 %v434, %v520
        %v557 = vadd.f32 %v437, %v520
        %v558 = vadd.f32 %v440, %v520
        %v559 = vadd.f32 %v443, %v520
        %v560 = vadd.f32 %v446, %v520
        %v561 = vadd.f32 %v449, %v520
        %v562 = vadd.f32 %v452, %v520
        %v563 = vadd.f32 %v455, %v520
        %v564 = vadd.f32 %v458, %v520
        %v565 = vadd.f32 %v461, %v520
        %v566 = vadd.f32 %v464, %v520
        %v567 = vadd.f32 %v467, %v520
        %v568 = vadd.f32 %v470, %v520
        %v569 = vadd.f32 %v473, %v520
        %v570 = vadd.f32 %v476, %v520
        %v571 = vadd.f32 %v479, %v520
        %v572 = vadd.f32 %v482, %v520
        %v573 = vadd.f32 %v485, %v520
        %v574 = vadd.f32 %v488, %v520
        %v575 = vadd.f32 %v491, %v520
        %v576 = vadd.f32 %v494, %v520
        %v577 = vadd.f32 %v497, %v520
        %v578 = vadd.f32 %v500, %v520
        %v579 = vadd.f32 %v503, %v520
        %v580 = vadd.f32 %v506, %v520
        %v581 = vadd.f32 %v509, %v520
        %v582 = vadd.f32 %v512, %v520
        %v583 = vadd.f32 %v515, %v520
        %v584 = vadd.f32 %v518, %v520
        %v649 = vperm.slane %v521, 0
        %v650 = vperm.slane %v521, 1
        %v651 = vperm.slane %v521, 2
        %v652 = vperm.slane %v521, 3
        %v653 = vperm.slane %v521, 4
        %v654 = vperm.slane %v521, 5
        %v655 = vperm.slane %v521, 6
        %v656 = vperm.slane %v521, 7
        %v657 = vperm.slane %v522, 0
        %v658 = vperm.slane %v522, 1
        %v659 = vperm.slane %v522, 2
        %v660 = vperm.slane %v522, 3
        %v661 = vperm.slane %v522, 4
        %v662 = vperm.slane %v522, 5
        %v663 = vperm.slane %v522, 6
        %v664 = vperm.slane %v522, 7
        %v665 = vperm.slane %v523, 0
        %v666 = vperm.slane %v523, 1
        %v667 = vperm.slane %v523, 2
        %v668 = vperm.slane %v523, 3
        %v669 = vperm.slane %v523, 4
        %v670 = vperm.slane %v523, 5
        %v671 = vperm.slane %v523, 6
        %v672 = vperm.slane %v523, 7
        %v673 = vperm.slane %v524, 0
        %v674 = vperm.slane %v524, 1
        %v675 = vperm.slane %v524, 2
        %v676 = vperm.slane %v524, 3
        %v677 = vperm.slane %v524, 4
        %v678 = vperm.slane %v524, 5
        %v679 = vperm.slane %v524, 6
        %v680 = vperm.slane %v524, 7
        %v681 = vperm.slane %v525, 0
        %v682 = vperm.slane %v525, 1
        %v683 = vperm.slane %v525, 2
        %v684 = vperm.slane %v525, 3
        %v685 = vperm.slane %v525, 4
        %v686 = vperm.slane %v525, 5
        %v687 = vperm.slane %v525, 6
        %v688 = vperm.slane %v525, 7
        %v689 = vperm.slane %v526, 0
        %v690 = vperm.slane %v526, 1
        %v691 = vperm.slane %v526, 2
        %v692 = vperm.slane %v526, 3
        %v693 = vperm.slane %v526, 4
        %v694 = vperm.slane %v526, 5
        %v695 = vperm.slane %v526, 6
        %v696 = vperm.slane %v526, 7
        %v697 = vperm.slane %v527, 0
        %v698 = vperm.slane %v527, 1
        %v699 = vperm.slane %v527, 2
        %v700 = vperm.slane %v527, 3
        %v701 = vperm.slane %v527, 4
        %v702 = vperm.slane %v527, 5
        %v703 = vperm.slane %v527, 6
        %v704 = vperm.slane %v527, 7
        %v705 = vperm.slane %v528, 0
        %v706 = vperm.slane %v528, 1
        %v707 = vperm.slane %v528, 2
        %v708 = vperm.slane %v528, 3
        %v709 = vperm.slane %v528, 4
        %v710 = vperm.slane %v528, 5
        %v711 = vperm.slane %v528, 6
        %v712 = vperm.slane %v528, 7
        %v713 = vperm.slane %v529, 0
        %v714 = vperm.slane %v529, 1
        %v715 = vperm.slane %v529, 2
        %v716 = vperm.slane %v529, 3
        %v717 = vperm.slane %v529, 4
        %v718 = vperm.slane %v529, 5
        %v719 = vperm.slane %v529, 6
        %v720 = vperm.slane %v529, 7
        %v721 = vperm.slane %v530, 0
        %v722 = vperm.slane %v530, 1
        %v723 = vperm.slane %v530, 2
        %v724 = vperm.slane %v530, 3
        %v725 = vperm.slane %v530, 4
        %v726 = vperm.slane %v530, 5
        %v727 = vperm.slane %v530, 6
        %v728 = vperm.slane %v530, 7
        %v729 = vperm.slane %v531, 0
        %v730 = vperm.slane %v531, 1
        %v731 = vperm.slane %v531, 2
        %v732 = vperm.slane %v531, 3
        %v733 = vperm.slane %v531, 4
        %v734 = vperm.slane %v531, 5
        %v735 = vperm.slane %v531, 6
        %v736 = vperm.slane %v531, 7
        %v737 = vperm.slane %v532, 0
        %v738 = vperm.slane %v532, 1
        %v739 = vperm.slane %v532, 2
        %v740 = vperm.slane %v532, 3
        %v741 = vperm.slane %v532, 4
        %v742 = vperm.slane %v532, 5
        %v743 = vperm.slane %v532, 6
        %v744 = vperm.slane %v532, 7
        %v745 = vperm.slane %v533, 0
        %v746 = vperm.slane %v533, 1
        %v747 = vperm.slane %v533, 2
        %v748 = vperm.slane %v533, 3
        %v749 = vperm.slane %v533, 4
        %v750 = vperm.slane %v533, 5
        %v751 = vperm.slane %v533, 6
        %v752 = vperm.slane %v533, 7
        %v753 = vperm.slane %v534, 0
        %v754 = vperm.slane %v534, 1
        %v755 = vperm.slane %v534, 2
        %v756 = vperm.slane %v534, 3
        %v757 = vperm.slane %v534, 4
        %v758 = vperm.slane %v534, 5
        %v759 = vperm.slane %v534, 6
        %v760 = vperm.slane %v534, 7
        %v761 = vperm.slane %v535, 0
        %v762 = vperm.slane %v535, 1
        %v763 = vperm.slane %v535, 2
        %v764 = vperm.slane %v535, 3
        %v765 = vperm.slane %v535, 4
        %v766 = vperm.slane %v535, 5
        %v767 = vperm.slane %v535, 6
        %v768 = vperm.slane %v535, 7
        %v769 = vperm.slane %v536, 0
        %v770 = vperm.slane %v536, 1
        %v771 = vperm.slane %v536, 2
        %v772 = vperm.slane %v536, 3
        %v773 = vperm.slane %v536, 4
        %v774 = vperm.slane %v536, 5
        %v775 = vperm.slane %v536, 6
        %v776 = vperm.slane %v536, 7
        %v777 = vperm.slane %v537, 0
        %v778 = vperm.slane %v537, 1
        %v779 = vperm.slane %v537, 2
        %v780 = vperm.slane %v537, 3
        %v781 = vperm.slane %v537, 4
        %v782 = vperm.slane %v537, 5
        %v783 = vperm.slane %v537, 6
        %v784 = vperm.slane %v537, 7
        %v785 = vperm.slane %v538, 0
        %v786 = vperm.slane %v538, 1
        %v787 = vperm.slane %v538, 2
        %v788 = vperm.slane %v538, 3
        %v789 = vperm.slane %v538, 4
        %v790 = vperm.slane %v538, 5
        %v791 = vperm.slane %v538, 6
        %v792 = vperm.slane %v538, 7
        %v793 = vperm.slane %v539, 0
        %v794 = vperm.slane %v539, 1
        %v795 = vperm.slane %v539, 2
        %v796 = vperm.slane %v539, 3
        %v797 = vperm.slane %v539, 4
        %v798 = vperm.slane %v539, 5
        %v799 = vperm.slane %v539, 6
        %v800 = vperm.slane %v539, 7
        %v801 = vperm.slane %v540, 0
        %v802 = vperm.slane %v540, 1
        %v803 = vperm.slane %v540, 2
        %v804 = vperm.slane %v540, 3
        %v805 = vperm.slane %v540, 4
        %v806 = vperm.slane %v540, 5
        %v807 = vperm.slane %v540, 6
        %v808 = vperm.slane %v540, 7
        %v809 = vperm.slane %v541, 0
        %v810 = vperm.slane %v541, 1
        %v811 = vperm.slane %v541, 2
        %v812 = vperm.slane %v541, 3
        %v813 = vperm.slane %v541, 4
        %v814 = vperm.slane %v541, 5
        %v815 = vperm.slane %v541, 6
        %v816 = vperm.slane %v541, 7
        %v817 = vperm.slane %v542, 0
        %v818 = vperm.slane %v542, 1
        %v819 = vperm.slane %v542, 2
        %v820 = vperm.slane %v542, 3
        %v821 = vperm.slane %v542, 4
        %v822 = vperm.slane %v542, 5
        %v823 = vperm.slane %v542, 6
        %v824 = vperm.slane %v542, 7
        %v825 = vperm.slane %v543, 0
        %v826 = vperm.slane %v543, 1
        %v827 = vperm.slane %v543, 2
        %v828 = vperm.slane %v543, 3
        %v829 = vperm.slane %v543, 4
        %v830 = vperm.slane %v543, 5
        %v831 = vperm.slane %v543, 6
        %v832 = vperm.slane %v543, 7
        %v833 = vperm.slane %v544, 0
        %v834 = vperm.slane %v544, 1
        %v835 = vperm.slane %v544, 2
        %v836 = vperm.slane %v544, 3
        %v837 = vperm.slane %v544, 4
        %v838 = vperm.slane %v544, 5
        %v839 = vperm.slane %v544, 6
        %v840 = vperm.slane %v544, 7
        %v841 = vperm.slane %v545, 0
        %v842 = vperm.slane %v545, 1
        %v843 = vperm.slane %v545, 2
        %v844 = vperm.slane %v545, 3
        %v845 = vperm.slane %v545, 4
        %v846 = vperm.slane %v545, 5
        %v847 = vperm.slane %v545, 6
        %v848 = vperm.slane %v545, 7
        %v849 = vperm.slane %v546, 0
        %v850 = vperm.slane %v546, 1
        %v851 = vperm.slane %v546, 2
        %v852 = vperm.slane %v546, 3
        %v853 = vperm.slane %v546, 4
        %v854 = vperm.slane %v546, 5
        %v855 = vperm.slane %v546, 6
        %v856 = vperm.slane %v546, 7
        %v857 = vperm.slane %v547, 0
        %v858 = vperm.slane %v547, 1
        %v859 = vperm.slane %v547, 2
        %v860 = vperm.slane %v547, 3
        %v861 = vperm.slane %v547, 4
        %v862 = vperm.slane %v547, 5
        %v863 = vperm.slane %v547, 6
        %v864 = vperm.slane %v547, 7
        %v865 = vperm.slane %v548, 0
        %v866 = vperm.slane %v548, 1
        %v867 = vperm.slane %v548, 2
        %v868 = vperm.slane %v548, 3
        %v869 = vperm.slane %v548, 4
        %v870 = vperm.slane %v548, 5
        %v871 = vperm.slane %v548, 6
        %v872 = vperm.slane %v548, 7
        %v873 = vperm.slane %v549, 0
        %v874 = vperm.slane %v549, 1
        %v875 = vperm.slane %v549, 2
        %v876 = vperm.slane %v549, 3
        %v877 = vperm.slane %v549, 4
        %v878 = vperm.slane %v549, 5
        %v879 = vperm.slane %v549, 6
        %v880 = vperm.slane %v549, 7
        %v881 = vperm.slane %v550, 0
        %v882 = vperm.slane %v550, 1
        %v883 = vperm.slane %v550, 2
        %v884 = vperm.slane %v550, 3
        %v885 = vperm.slane %v550, 4
        %v886 = vperm.slane %v550, 5
        %v887 = vperm.slane %v550, 6
        %v888 = vperm.slane %v550, 7
        %v889 = vperm.slane %v551, 0
        %v890 = vperm.slane %v551, 1
        %v891 = vperm.slane %v551, 2
        %v892 = vperm.slane %v551, 3
        %v893 = vperm.slane %v551, 4
        %v894 = vperm.slane %v551, 5
        %v895 = vperm.slane %v551, 6
        %v896 = vperm.slane %v551, 7
        %v897 = vperm.slane %v552, 0
        %v898 = vperm.slane %v552, 1
        %v899 = vperm.slane %v552, 2
        %v900 = vperm.slane %v552, 3
        %v901 = vperm.slane %v552, 4
        %v902 = vperm.slane %v552, 5
        %v903 = vperm.slane %v552, 6
        %v904 = vperm.slane %v552, 7
        %v905 = vperm.slane %v553, 0
        %v906 = vperm.slane %v553, 1
        %v907 = vperm.slane %v553, 2
        %v908 = vperm.slane %v553, 3
        %v909 = vperm.slane %v553, 4
        %v910 = vperm.slane %v553, 5
        %v911 = vperm.slane %v553, 6
        %v912 = vperm.slane %v553, 7
        %v913 = vperm.slane %v554, 0
        %v914 = vperm.slane %v554, 1
        %v915 = vperm.slane %v554, 2
        %v916 = vperm.slane %v554, 3
        %v917 = vperm.slane %v554, 4
        %v918 = vperm.slane %v554, 5
        %v919 = vperm.slane %v554, 6
        %v920 = vperm.slane %v554, 7
        %v921 = vperm.slane %v555, 0
        %v922 = vperm.slane %v555, 1
        %v923 = vperm.slane %v555, 2
        %v924 = vperm.slane %v555, 3
        %v925 = vperm.slane %v555, 4
        %v926 = vperm.slane %v555, 5
        %v927 = vperm.slane %v555, 6
        %v928 = vperm.slane %v555, 7
        %v929 = vperm.slane %v556, 0
        %v930 = vperm.slane %v556, 1
        %v931 = vperm.slane %v556, 2
        %v932 = vperm.slane %v556, 3
        %v933 = vperm.slane %v556, 4
        %v934 = vperm.slane %v556, 5
        %v935 = vperm.slane %v556, 6
        %v936 = vperm.slane %v556, 7
        %v937 = vperm.slane %v557, 0
        %v938 = vperm.slane %v557, 1
        %v939 = vperm.slane %v557, 2
        %v940 = vperm.slane %v557, 3
        %v941 = vperm.slane %v557, 4
        %v942 = vperm.slane %v557, 5
        %v943 = vperm.slane %v557, 6
        %v944 = vperm.slane %v557, 7
        %v945 = vperm.slane %v558, 0
        %v946 = vperm.slane %v558, 1
        %v947 = vperm.slane %v558, 2
        %v948 = vperm.slane %v558, 3
        %v949 = vperm.slane %v558, 4
        %v950 = vperm.slane %v558, 5
        %v951 = vperm.slane %v558, 6
        %v952 = vperm.slane %v558, 7
        %v953 = vperm.slane %v559, 0
        %v954 = vperm.slane %v559, 1
        %v955 = vperm.slane %v559, 2
        %v956 = vperm.slane %v559, 3
        %v957 = vperm.slane %v559, 4
        %v958 = vperm.slane %v559, 5
        %v959 = vperm.slane %v559, 6
        %v960 = vperm.slane %v559, 7
        %v961 = vperm.slane %v560, 0
        %v962 = vperm.slane %v560, 1
        %v963 = vperm.slane %v560, 2
        %v964 = vperm.slane %v560, 3
        %v965 = vperm.slane %v560, 4
        %v966 = vperm.slane %v560, 5
        %v967 = vperm.slane %v560, 6
        %v968 = vperm.slane %v560, 7
        %v969 = vperm.slane %v561, 0
        %v970 = vperm.slane %v561, 1
        %v971 = vperm.slane %v561, 2
        %v972 = vperm.slane %v561, 3
        %v973 = vperm.slane %v561, 4
        %v974 = vperm.slane %v561, 5
        %v975 = vperm.slane %v561, 6
        %v976 = vperm.slane %v561, 7
        %v977 = vperm.slane %v562, 0
        %v978 = vperm.slane %v562, 1
        %v979 = vperm.slane %v562, 2
        %v980 = vperm.slane %v562, 3
        %v981 = vperm.slane %v562, 4
        %v982 = vperm.slane %v562, 5
        %v983 = vperm.slane %v562, 6
        %v984 = vperm.slane %v562, 7
        %v985 = vperm.slane %v563, 0
        %v986 = vperm.slane %v563, 1
        %v987 = vperm.slane %v563, 2
        %v988 = vperm.slane %v563, 3
        %v989 = vperm.slane %v563, 4
        %v990 = vperm.slane %v563, 5
        %v991 = vperm.slane %v563, 6
        %v992 = vperm.slane %v563, 7
        %v993 = vperm.slane %v564, 0
        %v994 = vperm.slane %v564, 1
        %v995 = vperm.slane %v564, 2
        %v996 = vperm.slane %v564, 3
        %v997 = vperm.slane %v564, 4
        %v998 = vperm.slane %v564, 5
        %v999 = vperm.slane %v564, 6
        %v1000 = vperm.slane %v564, 7
        %v1001 = vperm.slane %v565, 0
        %v1002 = vperm.slane %v565, 1
        %v1003 = vperm.slane %v565, 2
        %v1004 = vperm.slane %v565, 3
        %v1005 = vperm.slane %v565, 4
        %v1006 = vperm.slane %v565, 5
        %v1007 = vperm.slane %v565, 6
        %v1008 = vperm.slane %v565, 7
        %v1009 = vperm.slane %v566, 0
        %v1010 = vperm.slane %v566, 1
        %v1011 = vperm.slane %v566, 2
        %v1012 = vperm.slane %v566, 3
        %v1013 = vperm.slane %v566, 4
        %v1014 = vperm.slane %v566, 5
        %v1015 = vperm.slane %v566, 6
        %v1016 = vperm.slane %v566, 7
        %v1017 = vperm.slane %v567, 0
        %v1018 = vperm.slane %v567, 1
        %v1019 = vperm.slane %v567, 2
        %v1020 = vperm.slane %v567, 3
        %v1021 = vperm.slane %v567, 4
        %v1022 = vperm.slane %v567, 5
        %v1023 = vperm.slane %v567, 6
        %v1024 = vperm.slane %v567, 7
        %v1025 = vperm.slane %v568, 0
        %v1026 = vperm.slane %v568, 1
        %v1027 = vperm.slane %v568, 2
        %v1028 = vperm.slane %v568, 3
        %v1029 = vperm.slane %v568, 4
        %v1030 = vperm.slane %v568, 5
        %v1031 = vperm.slane %v568, 6
        %v1032 = vperm.slane %v568, 7
        %v1033 = vperm.slane %v569, 0
        %v1034 = vperm.slane %v569, 1
        %v1035 = vperm.slane %v569, 2
        %v1036 = vperm.slane %v569, 3
        %v1037 = vperm.slane %v569, 4
        %v1038 = vperm.slane %v569, 5
        %v1039 = vperm.slane %v569, 6
        %v1040 = vperm.slane %v569, 7
        %v1041 = vperm.slane %v570, 0
        %v1042 = vperm.slane %v570, 1
        %v1043 = vperm.slane %v570, 2
        %v1044 = vperm.slane %v570, 3
        %v1045 = vperm.slane %v570, 4
        %v1046 = vperm.slane %v570, 5
        %v1047 = vperm.slane %v570, 6
        %v1048 = vperm.slane %v570, 7
        %v1049 = vperm.slane %v571, 0
        %v1050 = vperm.slane %v571, 1
        %v1051 = vperm.slane %v571, 2
        %v1052 = vperm.slane %v571, 3
        %v1053 = vperm.slane %v571, 4
        %v1054 = vperm.slane %v571, 5
        %v1055 = vperm.slane %v571, 6
        %v1056 = vperm.slane %v571, 7
        %v1057 = vperm.slane %v572, 0
        %v1058 = vperm.slane %v572, 1
        %v1059 = vperm.slane %v572, 2
        %v1060 = vperm.slane %v572, 3
        %v1061 = vperm.slane %v572, 4
        %v1062 = vperm.slane %v572, 5
        %v1063 = vperm.slane %v572, 6
        %v1064 = vperm.slane %v572, 7
        %v1065 = vperm.slane %v573, 0
        %v1066 = vperm.slane %v573, 1
        %v1067 = vperm.slane %v573, 2
        %v1068 = vperm.slane %v573, 3
        %v1069 = vperm.slane %v573, 4
        %v1070 = vperm.slane %v573, 5
        %v1071 = vperm.slane %v573, 6
        %v1072 = vperm.slane %v573, 7
        %v1073 = vperm.slane %v574, 0
        %v1074 = vperm.slane %v574, 1
        %v1075 = vperm.slane %v574, 2
        %v1076 = vperm.slane %v574, 3
        %v1077 = vperm.slane %v574, 4
        %v1078 = vperm.slane %v574, 5
        %v1079 = vperm.slane %v574, 6
        %v1080 = vperm.slane %v574, 7
        %v1081 = vperm.slane %v575, 0
        %v1082 = vperm.slane %v575, 1
        %v1083 = vperm.slane %v575, 2
        %v1084 = vperm.slane %v575, 3
        %v1085 = vperm.slane %v575, 4
        %v1086 = vperm.slane %v575, 5
        %v1087 = vperm.slane %v575, 6
        %v1088 = vperm.slane %v575, 7
        %v1089 = vperm.slane %v576, 0
        %v1090 = vperm.slane %v576, 1
        %v1091 = vperm.slane %v576, 2
        %v1092 = vperm.slane %v576, 3
        %v1093 = vperm.slane %v576, 4
        %v1094 = vperm.slane %v576, 5
        %v1095 = vperm.slane %v576, 6
        %v1096 = vperm.slane %v576, 7
        %v1097 = vperm.slane %v577, 0
        %v1098 = vperm.slane %v577, 1
        %v1099 = vperm.slane %v577, 2
        %v1100 = vperm.slane %v577, 3
        %v1101 = vperm.slane %v577, 4
        %v1102 = vperm.slane %v577, 5
        %v1103 = vperm.slane %v577, 6
        %v1104 = vperm.slane %v577, 7
        %v1105 = vperm.slane %v578, 0
        %v1106 = vperm.slane %v578, 1
        %v1107 = vperm.slane %v578, 2
        %v1108 = vperm.slane %v578, 3
        %v1109 = vperm.slane %v578, 4
        %v1110 = vperm.slane %v578, 5
        %v1111 = vperm.slane %v578, 6
        %v1112 = vperm.slane %v578, 7
        %v1113 = vperm.slane %v579, 0
        %v1114 = vperm.slane %v579, 1
        %v1115 = vperm.slane %v579, 2
        %v1116 = vperm.slane %v579, 3
        %v1117 = vperm.slane %v579, 4
        %v1118 = vperm.slane %v579, 5
        %v1119 = vperm.slane %v579, 6
        %v1120 = vperm.slane %v579, 7
        %v1121 = vperm.slane %v580, 0
        %v1122 = vperm.slane %v580, 1
        %v1123 = vperm.slane %v580, 2
        %v1124 = vperm.slane %v580, 3
        %v1125 = vperm.slane %v580, 4
        %v1126 = vperm.slane %v580, 5
        %v1127 = vperm.slane %v580, 6
        %v1128 = vperm.slane %v580, 7
        %v1129 = vperm.slane %v581, 0
        %v1130 = vperm.slane %v581, 1
        %v1131 = vperm.slane %v581, 2
        %v1132 = vperm.slane %v581, 3
        %v1133 = vperm.slane %v581, 4
        %v1134 = vperm.slane %v581, 5
        %v1135 = vperm.slane %v581, 6
        %v1136 = vperm.slane %v581, 7
        %v1137 = vperm.slane %v582, 0
        %v1138 = vperm.slane %v582, 1
        %v1139 = vperm.slane %v582, 2
        %v1140 = vperm.slane %v582, 3
        %v1141 = vperm.slane %v582, 4
        %v1142 = vperm.slane %v582, 5
        %v1143 = vperm.slane %v582, 6
        %v1144 = vperm.slane %v582, 7
        %v1145 = vperm.slane %v583, 0
        %v1146 = vperm.slane %v583, 1
        %v1147 = vperm.slane %v583, 2
        %v1148 = vperm.slane %v583, 3
        %v1149 = vperm.slane %v583, 4
        %v1150 = vperm.slane %v583, 5
        %v1151 = vperm.slane %v583, 6
        %v1152 = vperm.slane %v583, 7
        %v1153 = vperm.slane %v584, 0
        %v1154 = vperm.slane %v584, 1
        %v1155 = vperm.slane %v584, 2
        %v1156 = vperm.slane %v584, 3
        %v1157 = vperm.slane %v584, 4
        %v1158 = vperm.slane %v584, 5
        %v1159 = vperm.slane %v584, 6
        %v1160 = vperm.slane %v584, 7
        %1161 = vst [vmem:[#allocation1] ss:$9 sm:$0xff] %v649
        %s1162 = scalar_lea.vmem [#allocation1], 1
        %1163 = vst [vmem:[%s1162] ss:$9 sm:$0xff] %v650
        %s1164 = scalar_lea.vmem [#allocation1], 2
        %1165 = vst [vmem:[%s1164] ss:$9 sm:$0xff] %v651
        %s1166 = scalar_lea.vmem [#allocation1], 3
        %1167 = vst [vmem:[%s1166] ss:$9 sm:$0xff] %v652
        %s1168 = scalar_lea.vmem [#allocation1], 4
        %1169 = vst [vmem:[%s1168] ss:$9 sm:$0xff] %v653
        %s1170 = scalar_lea.vmem [#allocation1], 5
        %1171 = vst [vmem:[%s1170] ss:$9 sm:$0xff] %v654
        %s1172 = scalar_lea.vmem [#allocation1], 6
        %1173 = vst [vmem:[%s1172] ss:$9 sm:$0xff] %v655
        %s1174 = scalar_lea.vmem [#allocation1], 7
        %1175 = vst [vmem:[%s1174] ss:$9 sm:$0xff] %v656
        %v1176 = vld [vmem:[#allocation1] sm:$0xff]
        %1177 = vst [vmem:[#allocation1] ss:$9 sm:$0xff] %v657
        %1178 = vst [vmem:[%s1162] ss:$9 sm:$0xff] %v658
        %1179 = vst [vmem:[%s1164] ss:$9 sm:$0xff] %v659
        %1180 = vst [vmem:[%s1166] ss:$9 sm:$0xff] %v660
        %1181 = vst [vmem:[%s1168] ss:$9 sm:$0xff] %v661
        %1182 = vst [vmem:[%s1170] ss:$9 sm:$0xff] %v662
        %1183 = vst [vmem:[%s1172] ss:$9 sm:$0xff] %v663
        %1184 = vst [vmem:[%s1174] ss:$9 sm:$0xff] %v664
        %v1185 = vld [vmem:[#allocation1] sm:$0xff]
        %1186 = vst [vmem:[#allocation1] ss:$9 sm:$0xff] %v665
        %1187 = vst [vmem:[%s1162] ss:$9 sm:$0xff] %v666
        %1188 = vst [vmem:[%s1164] ss:$9 sm:$0xff] %v667
        %1189 = vst [vmem:[%s1166] ss:$9 sm:$0xff] %v668
        %1190 = vst [vmem:[%s1168] ss:$9 sm:$0xff] %v669
        %1191 = vst [vmem:[%s1170] ss:$9 sm:$0xff] %v670
        %1192 = vst [vmem:[%s1172] ss:$9 sm:$0xff] %v671
        %1193 = vst [vmem:[%s1174] ss:$9 sm:$0xff] %v672
        %v1194 = vld [vmem:[#allocation1] sm:$0xff]
        %1195 = vst [vmem:[#allocation1] ss:$9 sm:$0xff] %v673
        %1196 = vst [vmem:[%s1162] ss:$9 sm:$0xff] %v674
        %1197 = vst [vmem:[%s1164] ss:$9 sm:$0xff] %v675
        %1198 = vst [vmem:[%s1166] ss:$9 sm:$0xff] %v676
        %1199 = vst [vmem:[%s1168] ss:$9 sm:$0xff] %v677
        %1200 = vst [vmem:[%s1170] ss:$9 sm:$0xff] %v678
        %1201 = vst [vmem:[%s1172] ss:$9 sm:$0xff] %v679
        %1202 = vst [vmem:[%s1174] ss:$9 sm:$0xff] %v680
        %v1203 = vld [vmem:[#allocation1] sm:$0xff]
        %1204 = vst [vmem:[#allocation1] ss:$9 sm:$0xff] %v681
        %1205 = vst [vmem:[%s1162] ss:$9 sm:$0xff] %v682
        %1206 = vst [vmem:[%s1164] ss:$9 sm:$0xff] %v683
        %1207 = vst [vmem:[%s1166] ss:$9 sm:$0xff] %v684
        %1208 = vst [vmem:[%s1168] ss:$9 sm:$0xff] %v685
        %1209 = vst [vmem:[%s1170] ss:$9 sm:$0xff] %v686
        %1210 = vst [vmem:[%s1172] ss:$9 sm:$0xff] %v687
        %1211 = vst [vmem:[%s1174] ss:$9 sm:$0xff] %v688
        %v1212 = vld [vmem:[#allocation1] sm:$0xff]
        %1213 = vst [vmem:[#allocation1] ss:$9 sm:$0xff] %v689
        %1214 = vst [vmem:[%s1162] ss:$9 sm:$0xff] %v690
        %1215 = vst [vmem:[%s1164] ss:$9 sm:$0xff] %v691
        %1216 = vst [vmem:[%s1166] ss:$9 sm:$0xff] %v692
        %1217 = vst [vmem:[%s1168] ss:$9 sm:$0xff] %v693
        %1218 = vst [vmem:[%s1170] ss:$9 sm:$0xff] %v694
        %1219 = vst [vmem:[%s1172] ss:$9 sm:$0xff] %v695
        %1220 = vst [vmem:[%s1174] ss:$9 sm:$0xff] %v696
        %v1221 = vld [vmem:[#allocation1] sm:$0xff]
        %1222 = vst [vmem:[#allocation1] ss:$9 sm:$0xff] %v697
        %1223 = vst [vmem:[%s1162] ss:$9 sm:$0xff] %v698
        %1224 = vst [vmem:[%s1164] ss:$9 sm:$0xff] %v699
        %1225 = vst [vmem:[%s1166] ss:$9 sm:$0xff] %v700
        %1226 = vst [vmem:[%s1168] ss:$9 sm:$0xff] %v701
        %1227 = vst [vmem:[%s1170] ss:$9 sm:$0xff] %v702
        %1228 = vst [vmem:[%s1172] ss:$9 sm:$0xff] %v703
        %1229 = vst [vmem:[%s1174] ss:$9 sm:$0xff] %v704
        %v1230 = vld [vmem:[#allocation1] sm:$0xff]
        %1231 = vst [vmem:[#allocation1] ss:$9 sm:$0xff] %v705
        %1232 = vst [vmem:[%s1162] ss:$9 sm:$0xff] %v706
        %1233 = vst [vmem:[%s1164] ss:$9 sm:$0xff] %v707
        %1234 = vst [vmem:[%s1166] ss:$9 sm:$0xff] %v708
        %1235 = vst [vmem:[%s1168] ss:$9 sm:$0xff] %v709
        %1236 = vst [vmem:[%s1170] ss:$9 sm:$0xff] %v710
        %1237 = vst [vmem:[%s1172] ss:$9 sm:$0xff] %v711
        %1238 = vst [vmem:[%s1174] ss:$9 sm:$0xff] %v712
        %v1239 = vld [vmem:[#allocation1] sm:$0xff]
        %1240 = vst [vmem:[#allocation1] ss:$9 sm:$0xff] %v713
        %1241 = vst [vmem:[%s1162] ss:$9 sm:$0xff] %v714
        %1242 = vst [vmem:[%s1164] ss:$9 sm:$0xff] %v715
        %1243 = vst [vmem:[%s1166] ss:$9 sm:$0xff] %v716
        %1244 = vst [vmem:[%s1168] ss:$9 sm:$0xff] %v717
        %1245 = vst [vmem:[%s1170] ss:$9 sm:$0xff] %v718
        %1246 = vst [vmem:[%s1172] ss:$9 sm:$0xff] %v719
        %1247 = vst [vmem:[%s1174] ss:$9 sm:$0xff] %v720
        %v1248 = vld [vmem:[#allocation1] sm:$0xff]
        %1249 = vst [vmem:[#allocation1] ss:$9 sm:$0xff] %v721
        %1250 = vst [vmem:[%s1162] ss:$9 sm:$0xff] %v722
        %1251 = vst [vmem:[%s1164] ss:$9 sm:$0xff] %v723
        %1252 = vst [vmem:[%s1166] ss:$9 sm:$0xff] %v724
        %1253 = vst [vmem:[%s1168] ss:$9 sm:$0xff] %v725
        %1254 = vst [vmem:[%s1170] ss:$9 sm:$0xff] %v726
        %1255 = vst [vmem:[%s1172] ss:$9 sm:$0xff] %v727
        %1256 = vst [vmem:[%s1174] ss:$9 sm:$0xff] %v728
        %v1257 = vld [vmem:[#allocation1] sm:$0xff]
        %1258 = vst [vmem:[#allocation1] ss:$9 sm:$0xff] %v729
        %1259 = vst [vmem:[%s1162] ss:$9 sm:$0xff] %v730
        %1260 = vst [vmem:[%s1164] ss:$9 sm:$0xff] %v731
        %1261 = vst [vmem:[%s1166] ss:$9 sm:$0xff] %v732
        %1262 = vst [vmem:[%s1168] ss:$9 sm:$0xff] %v733
        %1263 = vst [vmem:[%s1170] ss:$9 sm:$0xff] %v734
        %1264 = vst [vmem:[%s1172] ss:$9 sm:$0xff] %v735
        %1265 = vst [vmem:[%s1174] ss:$9 sm:$0xff] %v736
        %v1266 = vld [vmem:[#allocation1] sm:$0xff]
        %1267 = vst [vmem:[#allocation1] ss:$9 sm:$0xff] %v737
        %1268 = vst [vmem:[%s1162] ss:$9 sm:$0xff] %v738
        %1269 = vst [vmem:[%s1164] ss:$9 sm:$0xff] %v739
        %1270 = vst [vmem:[%s1166] ss:$9 sm:$0xff] %v740
        %1271 = vst [vmem:[%s1168] ss:$9 sm:$0xff] %v741
        %1272 = vst [vmem:[%s1170] ss:$9 sm:$0xff] %v742
        %1273 = vst [vmem:[%s1172] ss:$9 sm:$0xff] %v743
        %1274 = vst [vmem:[%s1174] ss:$9 sm:$0xff] %v744
        %v1275 = vld [vmem:[#allocation1] sm:$0xff]
        %1276 = vst [vmem:[#allocation1] ss:$9 sm:$0xff] %v745
        %1277 = vst [vmem:[%s1162] ss:$9 sm:$0xff] %v746
        %1278 = vst [vmem:[%s1164] ss:$9 sm:$0xff] %v747
        %1279 = vst [vmem:[%s1166] ss:$9 sm:$0xff] %v748
        %1280 = vst [vmem:[%s1168] ss:$9 sm:$0xff] %v749
        %1281 = vst [vmem:[%s1170] ss:$9 sm:$0xff] %v750
        %1282 = vst [vmem:[%s1172] ss:$9 sm:$0xff] %v751
        %1283 = vst [vmem:[%s1174] ss:$9 sm:$0xff] %v752
        %v1284 = vld [vmem:[#allocation1] sm:$0xff]
        %1285 = vst [vmem:[#allocation1] ss:$9 sm:$0xff] %v753
        %1286 = vst [vmem:[%s1162] ss:$9 sm:$0xff] %v754
        %1287 = vst [vmem:[%s1164] ss:$9 sm:$0xff] %v755
        %1288 = vst [vmem:[%s1166] ss:$9 sm:$0xff] %v756
        %1289 = vst [vmem:[%s1168] ss:$9 sm:$0xff] %v757
        %1290 = vst [vmem:[%s1170] ss:$9 sm:$0xff] %v758
        %1291 = vst [vmem:[%s1172] ss:$9 sm:$0xff] %v759
        %1292 = vst [vmem:[%s1174] ss:$9 sm:$0xff] %v760
        %v1293 = vld [vmem:[#allocation1] sm:$0xff]
        %1294 = vst [vmem:[#allocation1] ss:$9 sm:$0xff] %v761
        %1295 = vst [vmem:[%s1162] ss:$9 sm:$0xff] %v762
        %1296 = vst [vmem:[%s1164] ss:$9 sm:$0xff] %v763
        %1297 = vst [vmem:[%s1166] ss:$9 sm:$0xff] %v764
        %1298 = vst [vmem:[%s1168] ss:$9 sm:$0xff] %v765
        %1299 = vst [vmem:[%s1170] ss:$9 sm:$0xff] %v766
        %1300 = vst [vmem:[%s1172] ss:$9 sm:$0xff] %v767
        %1301 = vst [vmem:[%s1174] ss:$9 sm:$0xff] %v768
        %v1302 = vld [vmem:[#allocation1] sm:$0xff]
        %1303 = vst [vmem:[#allocation1] ss:$9 sm:$0xff] %v769
        %1304 = vst [vmem:[%s1162] ss:$9 sm:$0xff] %v770
        %1305 = vst [vmem:[%s1164] ss:$9 sm:$0xff] %v771
        %1306 = vst [vmem:[%s1166] ss:$9 sm:$0xff] %v772
        %1307 = vst [vmem:[%s1168] ss:$9 sm:$0xff] %v773
        %1308 = vst [vmem:[%s1170] ss:$9 sm:$0xff] %v774
        %1309 = vst [vmem:[%s1172] ss:$9 sm:$0xff] %v775
        %1310 = vst [vmem:[%s1174] ss:$9 sm:$0xff] %v776
        %v1311 = vld [vmem:[#allocation1] sm:$0xff]
        %1312 = vst [vmem:[#allocation1] ss:$9 sm:$0xff] %v777
        %1313 = vst [vmem:[%s1162] ss:$9 sm:$0xff] %v778
        %1314 = vst [vmem:[%s1164] ss:$9 sm:$0xff] %v779
        %1315 = vst [vmem:[%s1166] ss:$9 sm:$0xff] %v780
        %1316 = vst [vmem:[%s1168] ss:$9 sm:$0xff] %v781
        %1317 = vst [vmem:[%s1170] ss:$9 sm:$0xff] %v782
        %1318 = vst [vmem:[%s1172] ss:$9 sm:$0xff] %v783
        %1319 = vst [vmem:[%s1174] ss:$9 sm:$0xff] %v784
        %v1320 = vld [vmem:[#allocation1] sm:$0xff]
        %1321 = vst [vmem:[#allocation1] ss:$9 sm:$0xff] %v785
        %1322 = vst [vmem:[%s1162] ss:$9 sm:$0xff] %v786
        %1323 = vst [vmem:[%s1164] ss:$9 sm:$0xff] %v787
        %1324 = vst [vmem:[%s1166] ss:$9 sm:$0xff] %v788
        %1325 = vst [vmem:[%s1168] ss:$9 sm:$0xff] %v789
        %1326 = vst [vmem:[%s1170] ss:$9 sm:$0xff] %v790
        %1327 = vst [vmem:[%s1172] ss:$9 sm:$0xff] %v791
        %1328 = vst [vmem:[%s1174] ss:$9 sm:$0xff] %v792
        %v1329 = vld [vmem:[#allocation1] sm:$0xff]
        %1330 = vst [vmem:[#allocation1] ss:$9 sm:$0xff] %v793
        %1331 = vst [vmem:[%s1162] ss:$9 sm:$0xff] %v794
        %1332 = vst [vmem:[%s1164] ss:$9 sm:$0xff] %v795
        %1333 = vst [vmem:[%s1166] ss:$9 sm:$0xff] %v796
        %1334 = vst [vmem:[%s1168] ss:$9 sm:$0xff] %v797
        %1335 = vst [vmem:[%s1170] ss:$9 sm:$0xff] %v798
        %1336 = vst [vmem:[%s1172] ss:$9 sm:$0xff] %v799
        %1337 = vst [vmem:[%s1174] ss:$9 sm:$0xff] %v800
        %v1338 = vld [vmem:[#allocation1] sm:$0xff]
        %1339 = vst [vmem:[#allocation1] ss:$9 sm:$0xff] %v801
        %1340 = vst [vmem:[%s1162] ss:$9 sm:$0xff] %v802
        %1341 = vst [vmem:[%s1164] ss:$9 sm:$0xff] %v803
        %1342 = vst [vmem:[%s1166] ss:$9 sm:$0xff] %v804
        %1343 = vst [vmem:[%s1168] ss:$9 sm:$0xff] %v805
        %1344 = vst [vmem:[%s1170] ss:$9 sm:$0xff] %v806
        %1345 = vst [vmem:[%s1172] ss:$9 sm:$0xff] %v807
        %1346 = vst [vmem:[%s1174] ss:$9 sm:$0xff] %v808
        %v1347 = vld [vmem:[#allocation1] sm:$0xff]
        %1348 = vst [vmem:[#allocation1] ss:$9 sm:$0xff] %v809
        %1349 = vst [vmem:[%s1162] ss:$9 sm:$0xff] %v810
        %1350 = vst [vmem:[%s1164] ss:$9 sm:$0xff] %v811
        %1351 = vst [vmem:[%s1166] ss:$9 sm:$0xff] %v812
        %1352 = vst [vmem:[%s1168] ss:$9 sm:$0xff] %v813
        %1353 = vst [vmem:[%s1170] ss:$9 sm:$0xff] %v814
        %1354 = vst [vmem:[%s1172] ss:$9 sm:$0xff] %v815
        %1355 = vst [vmem:[%s1174] ss:$9 sm:$0xff] %v816
        %v1356 = vld [vmem:[#allocation1] sm:$0xff]
        %1357 = vst [vmem:[#allocation1] ss:$9 sm:$0xff] %v817
        %1358 = vst [vmem:[%s1162] ss:$9 sm:$0xff] %v818
        %1359 = vst [vmem:[%s1164] ss:$9 sm:$0xff] %v819
        %1360 = vst [vmem:[%s1166] ss:$9 sm:$0xff] %v820
        %1361 = vst [vmem:[%s1168] ss:$9 sm:$0xff] %v821
        %1362 = vst [vmem:[%s1170] ss:$9 sm:$0xff] %v822
        %1363 = vst [vmem:[%s1172] ss:$9 sm:$0xff] %v823
        %1364 = vst [vmem:[%s1174] ss:$9 sm:$0xff] %v824
        %v1365 = vld [vmem:[#allocation1] sm:$0xff]
        %1366 = vst [vmem:[#allocation1] ss:$9 sm:$0xff] %v825
        %1367 = vst [vmem:[%s1162] ss:$9 sm:$0xff] %v826
        %1368 = vst [vmem:[%s1164] ss:$9 sm:$0xff] %v827
        %1369 = vst [vmem:[%s1166] ss:$9 sm:$0xff] %v828
        %1370 = vst [vmem:[%s1168] ss:$9 sm:$0xff] %v829
        %1371 = vst [vmem:[%s1170] ss:$9 sm:$0xff] %v830
        %1372 = vst [vmem:[%s1172] ss:$9 sm:$0xff] %v831
        %1373 = vst [vmem:[%s1174] ss:$9 sm:$0xff] %v832
        %v1374 = vld [vmem:[#allocation1] sm:$0xff]
        %1375 = vst [vmem:[#allocation1] ss:$9 sm:$0xff] %v833
        %1376 = vst [vmem:[%s1162] ss:$9 sm:$0xff] %v834
        %1377 = vst [vmem:[%s1164] ss:$9 sm:$0xff] %v835
        %1378 = vst [vmem:[%s1166] ss:$9 sm:$0xff] %v836
        %1379 = vst [vmem:[%s1168] ss:$9 sm:$0xff] %v837
        %1380 = vst [vmem:[%s1170] ss:$9 sm:$0xff] %v838
        %1381 = vst [vmem:[%s1172] ss:$9 sm:$0xff] %v839
        %1382 = vst [vmem:[%s1174] ss:$9 sm:$0xff] %v840
        %v1383 = vld [vmem:[#allocation1] sm:$0xff]
        %1384 = vst [vmem:[#allocation1] ss:$9 sm:$0xff] %v841
        %1385 = vst [vmem:[%s1162] ss:$9 sm:$0xff] %v842
        %1386 = vst [vmem:[%s1164] ss:$9 sm:$0xff] %v843
        %1387 = vst [vmem:[%s1166] ss:$9 sm:$0xff] %v844
        %1388 = vst [vmem:[%s1168] ss:$9 sm:$0xff] %v845
        %1389 = vst [vmem:[%s1170] ss:$9 sm:$0xff] %v846
        %1390 = vst [vmem:[%s1172] ss:$9 sm:$0xff] %v847
        %1391 = vst [vmem:[%s1174] ss:$9 sm:$0xff] %v848
        %v1392 = vld [vmem:[#allocation1] sm:$0xff]
        %1393 = vst [vmem:[#allocation1] ss:$9 sm:$0xff] %v849
        %1394 = vst [vmem:[%s1162] ss:$9 sm:$0xff] %v850
        %1395 = vst [vmem:[%s1164] ss:$9 sm:$0xff] %v851
        %1396 = vst [vmem:[%s1166] ss:$9 sm:$0xff] %v852
        %1397 = vst [vmem:[%s1168] ss:$9 sm:$0xff] %v853
        %1398 = vst [vmem:[%s1170] ss:$9 sm:$0xff] %v854
        %1399 = vst [vmem:[%s1172] ss:$9 sm:$0xff] %v855
        %1400 = vst [vmem:[%s1174] ss:$9 sm:$0xff] %v856
        %v1401 = vld [vmem:[#allocation1] sm:$0xff]
        %1402 = vst [vmem:[#allocation1] ss:$9 sm:$0xff] %v857
        %1403 = vst [vmem:[%s1162] ss:$9 sm:$0xff] %v858
        %1404 = vst [vmem:[%s1164] ss:$9 sm:$0xff] %v859
        %1405 = vst [vmem:[%s1166] ss:$9 sm:$0xff] %v860
        %1406 = vst [vmem:[%s1168] ss:$9 sm:$0xff] %v861
        %1407 = vst [vmem:[%s1170] ss:$9 sm:$0xff] %v862
        %1408 = vst [vmem:[%s1172] ss:$9 sm:$0xff] %v863
        %1409 = vst [vmem:[%s1174] ss:$9 sm:$0xff] %v864
        %v1410 = vld [vmem:[#allocation1] sm:$0xff]
        %1411 = vst [vmem:[#allocation1] ss:$9 sm:$0xff] %v865
        %1412 = vst [vmem:[%s1162] ss:$9 sm:$0xff] %v866
        %1413 = vst [vmem:[%s1164] ss:$9 sm:$0xff] %v867
        %1414 = vst [vmem:[%s1166] ss:$9 sm:$0xff] %v868
        %1415 = vst [vmem:[%s1168] ss:$9 sm:$0xff] %v869
        %1416 = vst [vmem:[%s1170] ss:$9 sm:$0xff] %v870
        %1417 = vst [vmem:[%s1172] ss:$9 sm:$0xff] %v871
        %1418 = vst [vmem:[%s1174] ss:$9 sm:$0xff] %v872
        %v1419 = vld [vmem:[#allocation1] sm:$0xff]
        %1420 = vst [vmem:[#allocation1] ss:$9 sm:$0xff] %v873
        %1421 = vst [vmem:[%s1162] ss:$9 sm:$0xff] %v874
        %1422 = vst [vmem:[%s1164] ss:$9 sm:$0xff] %v875
        %1423 = vst [vmem:[%s1166] ss:$9 sm:$0xff] %v876
        %1424 = vst [vmem:[%s1168] ss:$9 sm:$0xff] %v877
        %1425 = vst [vmem:[%s1170] ss:$9 sm:$0xff] %v878
        %1426 = vst [vmem:[%s1172] ss:$9 sm:$0xff] %v879
        %1427 = vst [vmem:[%s1174] ss:$9 sm:$0xff] %v880
        %v1428 = vld [vmem:[#allocation1] sm:$0xff]
        %1429 = vst [vmem:[#allocation1] ss:$9 sm:$0xff] %v881
        %1430 = vst [vmem:[%s1162] ss:$9 sm:$0xff] %v882
        %1431 = vst [vmem:[%s1164] ss:$9 sm:$0xff] %v883
        %1432 = vst [vmem:[%s1166] ss:$9 sm:$0xff] %v884
        %1433 = vst [vmem:[%s1168] ss:$9 sm:$0xff] %v885
        %1434 = vst [vmem:[%s1170] ss:$9 sm:$0xff] %v886
        %1435 = vst [vmem:[%s1172] ss:$9 sm:$0xff] %v887
        %1436 = vst [vmem:[%s1174] ss:$9 sm:$0xff] %v888
        %v1437 = vld [vmem:[#allocation1] sm:$0xff]
        %1438 = vst [vmem:[#allocation1] ss:$9 sm:$0xff] %v889
        %1439 = vst [vmem:[%s1162] ss:$9 sm:$0xff] %v890
        %1440 = vst [vmem:[%s1164] ss:$9 sm:$0xff] %v891
        %1441 = vst [vmem:[%s1166] ss:$9 sm:$0xff] %v892
        %1442 = vst [vmem:[%s1168] ss:$9 sm:$0xff] %v893
        %1443 = vst [vmem:[%s1170] ss:$9 sm:$0xff] %v894
        %1444 = vst [vmem:[%s1172] ss:$9 sm:$0xff] %v895
        %1445 = vst [vmem:[%s1174] ss:$9 sm:$0xff] %v896
        %v1446 = vld [vmem:[#allocation1] sm:$0xff]
        %1447 = vst [vmem:[#allocation1] ss:$9 sm:$0xff] %v897
        %1448 = vst [vmem:[%s1162] ss:$9 sm:$0xff] %v898
        %1449 = vst [vmem:[%s1164] ss:$9 sm:$0xff] %v899
        %1450 = vst [vmem:[%s1166] ss:$9 sm:$0xff] %v900
        %1451 = vst [vmem:[%s1168] ss:$9 sm:$0xff] %v901
        %1452 = vst [vmem:[%s1170] ss:$9 sm:$0xff] %v902
        %1453 = vst [vmem:[%s1172] ss:$9 sm:$0xff] %v903
        %1454 = vst [vmem:[%s1174] ss:$9 sm:$0xff] %v904
        %v1455 = vld [vmem:[#allocation1] sm:$0xff]
        %1456 = vst [vmem:[#allocation1] ss:$9 sm:$0xff] %v905
        %1457 = vst [vmem:[%s1162] ss:$9 sm:$0xff] %v906
        %1458 = vst [vmem:[%s1164] ss:$9 sm:$0xff] %v907
        %1459 = vst [vmem:[%s1166] ss:$9 sm:$0xff] %v908
        %1460 = vst [vmem:[%s1168] ss:$9 sm:$0xff] %v909
        %1461 = vst [vmem:[%s1170] ss:$9 sm:$0xff] %v910
        %1462 = vst [vmem:[%s1172] ss:$9 sm:$0xff] %v911
        %1463 = vst [vmem:[%s1174] ss:$9 sm:$0xff] %v912
        %v1464 = vld [vmem:[#allocation1] sm:$0xff]
        %1465 = vst [vmem:[#allocation1] ss:$9 sm:$0xff] %v913
        %1466 = vst [vmem:[%s1162] ss:$9 sm:$0xff] %v914
        %1467 = vst [vmem:[%s1164] ss:$9 sm:$0xff] %v915
        %1468 = vst [vmem:[%s1166] ss:$9 sm:$0xff] %v916
        %1469 = vst [vmem:[%s1168] ss:$9 sm:$0xff] %v917
        %1470 = vst [vmem:[%s1170] ss:$9 sm:$0xff] %v918
        %1471 = vst [vmem:[%s1172] ss:$9 sm:$0xff] %v919
        %1472 = vst [vmem:[%s1174] ss:$9 sm:$0xff] %v920
        %v1473 = vld [vmem:[#allocation1] sm:$0xff]
        %1474 = vst [vmem:[#allocation1] ss:$9 sm:$0xff] %v921
        %1475 = vst [vmem:[%s1162] ss:$9 sm:$0xff] %v922
        %1476 = vst [vmem:[%s1164] ss:$9 sm:$0xff] %v923
        %1477 = vst [vmem:[%s1166] ss:$9 sm:$0xff] %v924
        %1478 = vst [vmem:[%s1168] ss:$9 sm:$0xff] %v925
        %1479 = vst [vmem:[%s1170] ss:$9 sm:$0xff] %v926
        %1480 = vst [vmem:[%s1172] ss:$9 sm:$0xff] %v927
        %1481 = vst [vmem:[%s1174] ss:$9 sm:$0xff] %v928
        %v1482 = vld [vmem:[#allocation1] sm:$0xff]
        %1483 = vst [vmem:[#allocation1] ss:$9 sm:$0xff] %v929
        %1484 = vst [vmem:[%s1162] ss:$9 sm:$0xff] %v930
        %1485 = vst [vmem:[%s1164] ss:$9 sm:$0xff] %v931
        %1486 = vst [vmem:[%s1166] ss:$9 sm:$0xff] %v932
        %1487 = vst [vmem:[%s1168] ss:$9 sm:$0xff] %v933
        %1488 = vst [vmem:[%s1170] ss:$9 sm:$0xff] %v934
        %1489 = vst [vmem:[%s1172] ss:$9 sm:$0xff] %v935
        %1490 = vst [vmem:[%s1174] ss:$9 sm:$0xff] %v936
        %v1491 = vld [vmem:[#allocation1] sm:$0xff]
        %1492 = vst [vmem:[#allocation1] ss:$9 sm:$0xff] %v937
        %1493 = vst [vmem:[%s1162] ss:$9 sm:$0xff] %v938
        %1494 = vst [vmem:[%s1164] ss:$9 sm:$0xff] %v939
        %1495 = vst [vmem:[%s1166] ss:$9 sm:$0xff] %v940
        %1496 = vst [vmem:[%s1168] ss:$9 sm:$0xff] %v941
        %1497 = vst [vmem:[%s1170] ss:$9 sm:$0xff] %v942
        %1498 = vst [vmem:[%s1172] ss:$9 sm:$0xff] %v943
        %1499 = vst [vmem:[%s1174] ss:$9 sm:$0xff] %v944
        %v1500 = vld [vmem:[#allocation1] sm:$0xff]
        %1501 = vst [vmem:[#allocation1] ss:$9 sm:$0xff] %v945
        %1502 = vst [vmem:[%s1162] ss:$9 sm:$0xff] %v946
        %1503 = vst [vmem:[%s1164] ss:$9 sm:$0xff] %v947
        %1504 = vst [vmem:[%s1166] ss:$9 sm:$0xff] %v948
        %1505 = vst [vmem:[%s1168] ss:$9 sm:$0xff] %v949
        %1506 = vst [vmem:[%s1170] ss:$9 sm:$0xff] %v950
        %1507 = vst [vmem:[%s1172] ss:$9 sm:$0xff] %v951
        %1508 = vst [vmem:[%s1174] ss:$9 sm:$0xff] %v952
        %v1509 = vld [vmem:[#allocation1] sm:$0xff]
        %1510 = vst [vmem:[#allocation1] ss:$9 sm:$0xff] %v953
        %1511 = vst [vmem:[%s1162] ss:$9 sm:$0xff] %v954
        %1512 = vst [vmem:[%s1164] ss:$9 sm:$0xff] %v955
        %1513 = vst [vmem:[%s1166] ss:$9 sm:$0xff] %v956
        %1514 = vst [vmem:[%s1168] ss:$9 sm:$0xff] %v957
        %1515 = vst [vmem:[%s1170] ss:$9 sm:$0xff] %v958
        %1516 = vst [vmem:[%s1172] ss:$9 sm:$0xff] %v959
        %1517 = vst [vmem:[%s1174] ss:$9 sm:$0xff] %v960
        %v1518 = vld [vmem:[#allocation1] sm:$0xff]
        %1519 = vst [vmem:[#allocation1] ss:$9 sm:$0xff] %v961
        %1520 = vst [vmem:[%s1162] ss:$9 sm:$0xff] %v962
        %1521 = vst [vmem:[%s1164] ss:$9 sm:$0xff] %v963
        %1522 = vst [vmem:[%s1166] ss:$9 sm:$0xff] %v964
        %1523 = vst [vmem:[%s1168] ss:$9 sm:$0xff] %v965
        %1524 = vst [vmem:[%s1170] ss:$9 sm:$0xff] %v966
        %1525 = vst [vmem:[%s1172] ss:$9 sm:$0xff] %v967
        %1526 = vst [vmem:[%s1174] ss:$9 sm:$0xff] %v968
        %v1527 = vld [vmem:[#allocation1] sm:$0xff]
        %1528 = vst [vmem:[#allocation1] ss:$9 sm:$0xff] %v969
        %1529 = vst [vmem:[%s1162] ss:$9 sm:$0xff] %v970
        %1530 = vst [vmem:[%s1164] ss:$9 sm:$0xff] %v971
        %1531 = vst [vmem:[%s1166] ss:$9 sm:$0xff] %v972
        %1532 = vst [vmem:[%s1168] ss:$9 sm:$0xff] %v973
        %1533 = vst [vmem:[%s1170] ss:$9 sm:$0xff] %v974
        %1534 = vst [vmem:[%s1172] ss:$9 sm:$0xff] %v975
        %1535 = vst [vmem:[%s1174] ss:$9 sm:$0xff] %v976
        %v1536 = vld [vmem:[#allocation1] sm:$0xff]
        %1537 = vst [vmem:[#allocation1] ss:$9 sm:$0xff] %v977
        %1538 = vst [vmem:[%s1162] ss:$9 sm:$0xff] %v978
        %1539 = vst [vmem:[%s1164] ss:$9 sm:$0xff] %v979
        %1540 = vst [vmem:[%s1166] ss:$9 sm:$0xff] %v980
        %1541 = vst [vmem:[%s1168] ss:$9 sm:$0xff] %v981
        %1542 = vst [vmem:[%s1170] ss:$9 sm:$0xff] %v982
        %1543 = vst [vmem:[%s1172] ss:$9 sm:$0xff] %v983
        %1544 = vst [vmem:[%s1174] ss:$9 sm:$0xff] %v984
        %v1545 = vld [vmem:[#allocation1] sm:$0xff]
        %1546 = vst [vmem:[#allocation1] ss:$9 sm:$0xff] %v985
        %1547 = vst [vmem:[%s1162] ss:$9 sm:$0xff] %v986
        %1548 = vst [vmem:[%s1164] ss:$9 sm:$0xff] %v987
        %1549 = vst [vmem:[%s1166] ss:$9 sm:$0xff] %v988
        %1550 = vst [vmem:[%s1168] ss:$9 sm:$0xff] %v989
        %1551 = vst [vmem:[%s1170] ss:$9 sm:$0xff] %v990
        %1552 = vst [vmem:[%s1172] ss:$9 sm:$0xff] %v991
        %1553 = vst [vmem:[%s1174] ss:$9 sm:$0xff] %v992
        %v1554 = vld [vmem:[#allocation1] sm:$0xff]
        %1555 = vst [vmem:[#allocation1] ss:$9 sm:$0xff] %v993
        %1556 = vst [vmem:[%s1162] ss:$9 sm:$0xff] %v994
        %1557 = vst [vmem:[%s1164] ss:$9 sm:$0xff] %v995
        %1558 = vst [vmem:[%s1166] ss:$9 sm:$0xff] %v996
        %1559 = vst [vmem:[%s1168] ss:$9 sm:$0xff] %v997
        %1560 = vst [vmem:[%s1170] ss:$9 sm:$0xff] %v998
        %1561 = vst [vmem:[%s1172] ss:$9 sm:$0xff] %v999
        %1562 = vst [vmem:[%s1174] ss:$9 sm:$0xff] %v1000
        %v1563 = vld [vmem:[#allocation1] sm:$0xff]
        %1564 = vst [vmem:[#allocation1] ss:$9 sm:$0xff] %v1001
        %1565 = vst [vmem:[%s1162] ss:$9 sm:$0xff] %v1002
        %1566 = vst [vmem:[%s1164] ss:$9 sm:$0xff] %v1003
        %1567 = vst [vmem:[%s1166] ss:$9 sm:$0xff] %v1004
        %1568 = vst [vmem:[%s1168] ss:$9 sm:$0xff] %v1005
        %1569 = vst [vmem:[%s1170] ss:$9 sm:$0xff] %v1006
        %1570 = vst [vmem:[%s1172] ss:$9 sm:$0xff] %v1007
        %1571 = vst [vmem:[%s1174] ss:$9 sm:$0xff] %v1008
        %v1572 = vld [vmem:[#allocation1] sm:$0xff]
        %1573 = vst [vmem:[#allocation1] ss:$9 sm:$0xff] %v1009
        %1574 = vst [vmem:[%s1162] ss:$9 sm:$0xff] %v1010
        %1575 = vst [vmem:[%s1164] ss:$9 sm:$0xff] %v1011
        %1576 = vst [vmem:[%s1166] ss:$9 sm:$0xff] %v1012
        %1577 = vst [vmem:[%s1168] ss:$9 sm:$0xff] %v1013
        %1578 = vst [vmem:[%s1170] ss:$9 sm:$0xff] %v1014
        %1579 = vst [vmem:[%s1172] ss:$9 sm:$0xff] %v1015
        %1580 = vst [vmem:[%s1174] ss:$9 sm:$0xff] %v1016
        %v1581 = vld [vmem:[#allocation1] sm:$0xff]
        %1582 = vst [vmem:[#allocation1] ss:$9 sm:$0xff] %v1017
        %1583 = vst [vmem:[%s1162] ss:$9 sm:$0xff] %v1018
        %1584 = vst [vmem:[%s1164] ss:$9 sm:$0xff] %v1019
        %1585 = vst [vmem:[%s1166] ss:$9 sm:$0xff] %v1020
        %1586 = vst [vmem:[%s1168] ss:$9 sm:$0xff] %v1021
        %1587 = vst [vmem:[%s1170] ss:$9 sm:$0xff] %v1022
        %1588 = vst [vmem:[%s1172] ss:$9 sm:$0xff] %v1023
        %1589 = vst [vmem:[%s1174] ss:$9 sm:$0xff] %v1024
        %v1590 = vld [vmem:[#allocation1] sm:$0xff]
        %1591 = vst [vmem:[#allocation1] ss:$9 sm:$0xff] %v1025
        %1592 = vst [vmem:[%s1162] ss:$9 sm:$0xff] %v1026
        %1593 = vst [vmem:[%s1164] ss:$9 sm:$0xff] %v1027
        %1594 = vst [vmem:[%s1166] ss:$9 sm:$0xff] %v1028
        %1595 = vst [vmem:[%s1168] ss:$9 sm:$0xff] %v1029
        %1596 = vst [vmem:[%s1170] ss:$9 sm:$0xff] %v1030
        %1597 = vst [vmem:[%s1172] ss:$9 sm:$0xff] %v1031
        %1598 = vst [vmem:[%s1174] ss:$9 sm:$0xff] %v1032
        %v1599 = vld [vmem:[#allocation1] sm:$0xff]
        %1600 = vst [vmem:[#allocation1] ss:$9 sm:$0xff] %v1033
        %1601 = vst [vmem:[%s1162] ss:$9 sm:$0xff] %v1034
        %1602 = vst [vmem:[%s1164] ss:$9 sm:$0xff] %v1035
        %1603 = vst [vmem:[%s1166] ss:$9 sm:$0xff] %v1036
        %1604 = vst [vmem:[%s1168] ss:$9 sm:$0xff] %v1037
        %1605 = vst [vmem:[%s1170] ss:$9 sm:$0xff] %v1038
        %1606 = vst [vmem:[%s1172] ss:$9 sm:$0xff] %v1039
        %1607 = vst [vmem:[%s1174] ss:$9 sm:$0xff] %v1040
        %v1608 = vld [vmem:[#allocation1] sm:$0xff]
        %1609 = vst [vmem:[#allocation1] ss:$9 sm:$0xff] %v1041
        %1610 = vst [vmem:[%s1162] ss:$9 sm:$0xff] %v1042
        %1611 = vst [vmem:[%s1164] ss:$9 sm:$0xff] %v1043
        %1612 = vst [vmem:[%s1166] ss:$9 sm:$0xff] %v1044
        %1613 = vst [vmem:[%s1168] ss:$9 sm:$0xff] %v1045
        %1614 = vst [vmem:[%s1170] ss:$9 sm:$0xff] %v1046
        %1615 = vst [vmem:[%s1172] ss:$9 sm:$0xff] %v1047
        %1616 = vst [vmem:[%s1174] ss:$9 sm:$0xff] %v1048
        %v1617 = vld [vmem:[#allocation1] sm:$0xff]
        %1618 = vst [vmem:[#allocation1] ss:$9 sm:$0xff] %v1049
        %1619 = vst [vmem:[%s1162] ss:$9 sm:$0xff] %v1050
        %1620 = vst [vmem:[%s1164] ss:$9 sm:$0xff] %v1051
        %1621 = vst [vmem:[%s1166] ss:$9 sm:$0xff] %v1052
        %1622 = vst [vmem:[%s1168] ss:$9 sm:$0xff] %v1053
        %1623 = vst [vmem:[%s1170] ss:$9 sm:$0xff] %v1054
        %1624 = vst [vmem:[%s1172] ss:$9 sm:$0xff] %v1055
        %1625 = vst [vmem:[%s1174] ss:$9 sm:$0xff] %v1056
        %v1626 = vld [vmem:[#allocation1] sm:$0xff]
        %1627 = vst [vmem:[#allocation1] ss:$9 sm:$0xff] %v1057
        %1628 = vst [vmem:[%s1162] ss:$9 sm:$0xff] %v1058
        %1629 = vst [vmem:[%s1164] ss:$9 sm:$0xff] %v1059
        %1630 = vst [vmem:[%s1166] ss:$9 sm:$0xff] %v1060
        %1631 = vst [vmem:[%s1168] ss:$9 sm:$0xff] %v1061
        %1632 = vst [vmem:[%s1170] ss:$9 sm:$0xff] %v1062
        %1633 = vst [vmem:[%s1172] ss:$9 sm:$0xff] %v1063
        %1634 = vst [vmem:[%s1174] ss:$9 sm:$0xff] %v1064
        %v1635 = vld [vmem:[#allocation1] sm:$0xff]
        %1636 = vst [vmem:[#allocation1] ss:$9 sm:$0xff] %v1065
        %1637 = vst [vmem:[%s1162] ss:$9 sm:$0xff] %v1066
        %1638 = vst [vmem:[%s1164] ss:$9 sm:$0xff] %v1067
        %1639 = vst [vmem:[%s1166] ss:$9 sm:$0xff] %v1068
        %1640 = vst [vmem:[%s1168] ss:$9 sm:$0xff] %v1069
        %1641 = vst [vmem:[%s1170] ss:$9 sm:$0xff] %v1070
        %1642 = vst [vmem:[%s1172] ss:$9 sm:$0xff] %v1071
        %1643 = vst [vmem:[%s1174] ss:$9 sm:$0xff] %v1072
        %v1644 = vld [vmem:[#allocation1] sm:$0xff]
        %1645 = vst [vmem:[#allocation1] ss:$9 sm:$0xff] %v1073
        %1646 = vst [vmem:[%s1162] ss:$9 sm:$0xff] %v1074
        %1647 = vst [vmem:[%s1164] ss:$9 sm:$0xff] %v1075
        %1648 = vst [vmem:[%s1166] ss:$9 sm:$0xff] %v1076
        %1649 = vst [vmem:[%s1168] ss:$9 sm:$0xff] %v1077
        %1650 = vst [vmem:[%s1170] ss:$9 sm:$0xff] %v1078
        %1651 = vst [vmem:[%s1172] ss:$9 sm:$0xff] %v1079
        %1652 = vst [vmem:[%s1174] ss:$9 sm:$0xff] %v1080
        %v1653 = vld [vmem:[#allocation1] sm:$0xff]
        %1654 = vst [vmem:[#allocation1] ss:$9 sm:$0xff] %v1081
        %1655 = vst [vmem:[%s1162] ss:$9 sm:$0xff] %v1082
        %1656 = vst [vmem:[%s1164] ss:$9 sm:$0xff] %v1083
        %1657 = vst [vmem:[%s1166] ss:$9 sm:$0xff] %v1084
        %1658 = vst [vmem:[%s1168] ss:$9 sm:$0xff] %v1085
        %1659 = vst [vmem:[%s1170] ss:$9 sm:$0xff] %v1086
        %1660 = vst [vmem:[%s1172] ss:$9 sm:$0xff] %v1087
        %1661 = vst [vmem:[%s1174] ss:$9 sm:$0xff] %v1088
        %v1662 = vld [vmem:[#allocation1] sm:$0xff]
        %1663 = vst [vmem:[#allocation1] ss:$9 sm:$0xff] %v1089
        %1664 = vst [vmem:[%s1162] ss:$9 sm:$0xff] %v1090
        %1665 = vst [vmem:[%s1164] ss:$9 sm:$0xff] %v1091
        %1666 = vst [vmem:[%s1166] ss:$9 sm:$0xff] %v1092
        %1667 = vst [vmem:[%s1168] ss:$9 sm:$0xff] %v1093
        %1668 = vst [vmem:[%s1170] ss:$9 sm:$0xff] %v1094
        %1669 = vst [vmem:[%s1172] ss:$9 sm:$0xff] %v1095
        %1670 = vst [vmem:[%s1174] ss:$9 sm:$0xff] %v1096
        %v1671 = vld [vmem:[#allocation1] sm:$0xff]
        %1672 = vst [vmem:[#allocation1] ss:$9 sm:$0xff] %v1097
        %1673 = vst [vmem:[%s1162] ss:$9 sm:$0xff] %v1098
        %1674 = vst [vmem:[%s1164] ss:$9 sm:$0xff] %v1099
        %1675 = vst [vmem:[%s1166] ss:$9 sm:$0xff] %v1100
        %1676 = vst [vmem:[%s1168] ss:$9 sm:$0xff] %v1101
        %1677 = vst [vmem:[%s1170] ss:$9 sm:$0xff] %v1102
        %1678 = vst [vmem:[%s1172] ss:$9 sm:$0xff] %v1103
        %1679 = vst [vmem:[%s1174] ss:$9 sm:$0xff] %v1104
        %v1680 = vld [vmem:[#allocation1] sm:$0xff]
        %1681 = vst [vmem:[#allocation1] ss:$9 sm:$0xff] %v1105
        %1682 = vst [vmem:[%s1162] ss:$9 sm:$0xff] %v1106
        %1683 = vst [vmem:[%s1164] ss:$9 sm:$0xff] %v1107
        %1684 = vst [vmem:[%s1166] ss:$9 sm:$0xff] %v1108
        %1685 = vst [vmem:[%s1168] ss:$9 sm:$0xff] %v1109
        %1686 = vst [vmem:[%s1170] ss:$9 sm:$0xff] %v1110
        %1687 = vst [vmem:[%s1172] ss:$9 sm:$0xff] %v1111
        %1688 = vst [vmem:[%s1174] ss:$9 sm:$0xff] %v1112
        %v1689 = vld [vmem:[#allocation1] sm:$0xff]
        %1690 = vst [vmem:[#allocation1] ss:$9 sm:$0xff] %v1113
        %1691 = vst [vmem:[%s1162] ss:$9 sm:$0xff] %v1114
        %1692 = vst [vmem:[%s1164] ss:$9 sm:$0xff] %v1115
        %1693 = vst [vmem:[%s1166] ss:$9 sm:$0xff] %v1116
        %1694 = vst [vmem:[%s1168] ss:$9 sm:$0xff] %v1117
        %1695 = vst [vmem:[%s1170] ss:$9 sm:$0xff] %v1118
        %1696 = vst [vmem:[%s1172] ss:$9 sm:$0xff] %v1119
        %1697 = vst [vmem:[%s1174] ss:$9 sm:$0xff] %v1120
        %v1698 = vld [vmem:[#allocation1] sm:$0xff]
        %1699 = vst [vmem:[#allocation1] ss:$9 sm:$0xff] %v1121
        %1700 = vst [vmem:[%s1162] ss:$9 sm:$0xff] %v1122
        %1701 = vst [vmem:[%s1164] ss:$9 sm:$0xff] %v1123
        %1702 = vst [vmem:[%s1166] ss:$9 sm:$0xff] %v1124
        %1703 = vst [vmem:[%s1168] ss:$9 sm:$0xff] %v1125
        %1704 = vst [vmem:[%s1170] ss:$9 sm:$0xff] %v1126
        %1705 = vst [vmem:[%s1172] ss:$9 sm:$0xff] %v1127
        %1706 = vst [vmem:[%s1174] ss:$9 sm:$0xff] %v1128
        %v1707 = vld [vmem:[#allocation1] sm:$0xff]
        %1708 = vst [vmem:[#allocation1] ss:$9 sm:$0xff] %v1129
        %1709 = vst [vmem:[%s1162] ss:$9 sm:$0xff] %v1130
        %1710 = vst [vmem:[%s1164] ss:$9 sm:$0xff] %v1131
        %1711 = vst [vmem:[%s1166] ss:$9 sm:$0xff] %v1132
        %1712 = vst [vmem:[%s1168] ss:$9 sm:$0xff] %v1133
        %1713 = vst [vmem:[%s1170] ss:$9 sm:$0xff] %v1134
        %1714 = vst [vmem:[%s1172] ss:$9 sm:$0xff] %v1135
        %1715 = vst [vmem:[%s1174] ss:$9 sm:$0xff] %v1136
        %v1716 = vld [vmem:[#allocation1] sm:$0xff]
        %1717 = vst [vmem:[#allocation1] ss:$9 sm:$0xff] %v1137
        %1718 = vst [vmem:[%s1162] ss:$9 sm:$0xff] %v1138
        %1719 = vst [vmem:[%s1164] ss:$9 sm:$0xff] %v1139
        %1720 = vst [vmem:[%s1166] ss:$9 sm:$0xff] %v1140
        %1721 = vst [vmem:[%s1168] ss:$9 sm:$0xff] %v1141
        %1722 = vst [vmem:[%s1170] ss:$9 sm:$0xff] %v1142
        %1723 = vst [vmem:[%s1172] ss:$9 sm:$0xff] %v1143
        %1724 = vst [vmem:[%s1174] ss:$9 sm:$0xff] %v1144
        %v1725 = vld [vmem:[#allocation1] sm:$0xff]
        %1726 = vst [vmem:[#allocation1] ss:$9 sm:$0xff] %v1145
        %1727 = vst [vmem:[%s1162] ss:$9 sm:$0xff] %v1146
        %1728 = vst [vmem:[%s1164] ss:$9 sm:$0xff] %v1147
        %1729 = vst [vmem:[%s1166] ss:$9 sm:$0xff] %v1148
        %1730 = vst [vmem:[%s1168] ss:$9 sm:$0xff] %v1149
        %1731 = vst [vmem:[%s1170] ss:$9 sm:$0xff] %v1150
        %1732 = vst [vmem:[%s1172] ss:$9 sm:$0xff] %v1151
        %1733 = vst [vmem:[%s1174] ss:$9 sm:$0xff] %v1152
        %v1734 = vld [vmem:[#allocation1] sm:$0xff]
        %1735 = vst [vmem:[#allocation1] ss:$9 sm:$0xff] %v1153
        %1736 = vst [vmem:[%s1162] ss:$9 sm:$0xff] %v1154
        %1737 = vst [vmem:[%s1164] ss:$9 sm:$0xff] %v1155
        %1738 = vst [vmem:[%s1166] ss:$9 sm:$0xff] %v1156
        %1739 = vst [vmem:[%s1168] ss:$9 sm:$0xff] %v1157
        %1740 = vst [vmem:[%s1170] ss:$9 sm:$0xff] %v1158
        %1741 = vst [vmem:[%s1172] ss:$9 sm:$0xff] %v1159
        %1742 = vst [vmem:[%s1174] ss:$9 sm:$0xff] %v1160
        %v1743 = vld [vmem:[#allocation1] sm:$0xff]
        %1744 = vset.pattern.permute.xlu0 0
        %1745 = vperm.xlu0 %1744, %v1176
        %v1746 = vpop.permute.xlu0 %1745
        %1747 = vset.pattern.permute.xlu0 0
        %1748 = vperm.xlu0 %1747, %v1185
        %v1749 = vpop.permute.xlu0 %1748
        %1750 = vset.pattern.permute.xlu0 0
        %1751 = vperm.xlu0 %1750, %v1194
        %v1752 = vpop.permute.xlu0 %1751
        %1753 = vset.pattern.permute.xlu0 0
        %1754 = vperm.xlu0 %1753, %v1203
        %v1755 = vpop.permute.xlu0 %1754
        %1756 = vset.pattern.permute.xlu0 0
        %1757 = vperm.xlu0 %1756, %v1212
        %v1758 = vpop.permute.xlu0 %1757
        %1759 = vset.pattern.permute.xlu0 0
        %1760 = vperm.xlu0 %1759, %v1221
        %v1761 = vpop.permute.xlu0 %1760
        %1762 = vset.pattern.permute.xlu0 0
        %1763 = vperm.xlu0 %1762, %v1230
        %v1764 = vpop.permute.xlu0 %1763
        %1765 = vset.pattern.permute.xlu0 0
        %1766 = vperm.xlu0 %1765, %v1239
        %v1767 = vpop.permute.xlu0 %1766
        %1768 = vset.pattern.permute.xlu0 0
        %1769 = vperm.xlu0 %1768, %v1248
        %v1770 = vpop.permute.xlu0 %1769
        %1771 = vset.pattern.permute.xlu0 0
        %1772 = vperm.xlu0 %1771, %v1257
        %v1773 = vpop.permute.xlu0 %1772
        %1774 = vset.pattern.permute.xlu0 0
        %1775 = vperm.xlu0 %1774, %v1266
        %v1776 = vpop.permute.xlu0 %1775
        %1777 = vset.pattern.permute.xlu0 0
        %1778 = vperm.xlu0 %1777, %v1275
        %v1779 = vpop.permute.xlu0 %1778
        %1780 = vset.pattern.permute.xlu0 0
        %1781 = vperm.xlu0 %1780, %v1284
        %v1782 = vpop.permute.xlu0 %1781
        %1783 = vset.pattern.permute.xlu0 0
        %1784 = vperm.xlu0 %1783, %v1293
        %v1785 = vpop.permute.xlu0 %1784
        %1786 = vset.pattern.permute.xlu0 0
        %1787 = vperm.xlu0 %1786, %v1302
        %v1788 = vpop.permute.xlu0 %1787
        %1789 = vset.pattern.permute.xlu0 0
        %1790 = vperm.xlu0 %1789, %v1311
        %v1791 = vpop.permute.xlu0 %1790
        %1792 = vset.pattern.permute.xlu0 0
        %1793 = vperm.xlu0 %1792, %v1320
        %v1794 = vpop.permute.xlu0 %1793
        %1795 = vset.pattern.permute.xlu0 0
        %1796 = vperm.xlu0 %1795, %v1329
        %v1797 = vpop.permute.xlu0 %1796
        %1798 = vset.pattern.permute.xlu0 0
        %1799 = vperm.xlu0 %1798, %v1338
        %v1800 = vpop.permute.xlu0 %1799
        %1801 = vset.pattern.permute.xlu0 0
        %1802 = vperm.xlu0 %1801, %v1347
        %v1803 = vpop.permute.xlu0 %1802
        %1804 = vset.pattern.permute.xlu0 0
        %1805 = vperm.xlu0 %1804, %v1356
        %v1806 = vpop.permute.xlu0 %1805
        %1807 = vset.pattern.permute.xlu0 0
        %1808 = vperm.xlu0 %1807, %v1365
        %v1809 = vpop.permute.xlu0 %1808
        %1810 = vset.pattern.permute.xlu0 0
        %1811 = vperm.xlu0 %1810, %v1374
        %v1812 = vpop.permute.xlu0 %1811
        %1813 = vset.pattern.permute.xlu0 0
        %1814 = vperm.xlu0 %1813, %v1383
        %v1815 = vpop.permute.xlu0 %1814
        %1816 = vset.pattern.permute.xlu0 0
        %1817 = vperm.xlu0 %1816, %v1392
        %v1818 = vpop.permute.xlu0 %1817
        %1819 = vset.pattern.permute.xlu0 0
        %1820 = vperm.xlu0 %1819, %v1401
        %v1821 = vpop.permute.xlu0 %1820
        %1822 = vset.pattern.permute.xlu0 0
        %1823 = vperm.xlu0 %1822, %v1410
        %v1824 = vpop.permute.xlu0 %1823
        %1825 = vset.pattern.permute.xlu0 0
        %1826 = vperm.xlu0 %1825, %v1419
        %v1827 = vpop.permute.xlu0 %1826
        %1828 = vset.pattern.permute.xlu0 0
        %1829 = vperm.xlu0 %1828, %v1428
        %v1830 = vpop.permute.xlu0 %1829
        %1831 = vset.pattern.permute.xlu0 0
        %1832 = vperm.xlu0 %1831, %v1437
        %v1833 = vpop.permute.xlu0 %1832
        %1834 = vset.pattern.permute.xlu0 0
        %1835 = vperm.xlu0 %1834, %v1446
        %v1836 = vpop.permute.xlu0 %1835
        %1837 = vset.pattern.permute.xlu0 0
        %1838 = vperm.xlu0 %1837, %v1455
        %v1839 = vpop.permute.xlu0 %1838
        %1840 = vset.pattern.permute.xlu0 0
        %1841 = vperm.xlu0 %1840, %v1464
        %v1842 = vpop.permute.xlu0 %1841
        %1843 = vset.pattern.permute.xlu0 0
        %1844 = vperm.xlu0 %1843, %v1473
        %v1845 = vpop.permute.xlu0 %1844
        %1846 = vset.pattern.permute.xlu0 0
        %1847 = vperm.xlu0 %1846, %v1482
        %v1848 = vpop.permute.xlu0 %1847
        %1849 = vset.pattern.permute.xlu0 0
        %1850 = vperm.xlu0 %1849, %v1491
        %v1851 = vpop.permute.xlu0 %1850
        %1852 = vset.pattern.permute.xlu0 0
        %1853 = vperm.xlu0 %1852, %v1500
        %v1854 = vpop.permute.xlu0 %1853
        %1855 = vset.pattern.permute.xlu0 0
        %1856 = vperm.xlu0 %1855, %v1509
        %v1857 = vpop.permute.xlu0 %1856
        %1858 = vset.pattern.permute.xlu0 0
        %1859 = vperm.xlu0 %1858, %v1518
        %v1860 = vpop.permute.xlu0 %1859
        %1861 = vset.pattern.permute.xlu0 0
        %1862 = vperm.xlu0 %1861, %v1527
        %v1863 = vpop.permute.xlu0 %1862
        %1864 = vset.pattern.permute.xlu0 0
        %1865 = vperm.xlu0 %1864, %v1536
        %v1866 = vpop.permute.xlu0 %1865
        %1867 = vset.pattern.permute.xlu0 0
        %1868 = vperm.xlu0 %1867, %v1545
        %v1869 = vpop.permute.xlu0 %1868
        %1870 = vset.pattern.permute.xlu0 0
        %1871 = vperm.xlu0 %1870, %v1554
        %v1872 = vpop.permute.xlu0 %1871
        %1873 = vset.pattern.permute.xlu0 0
        %1874 = vperm.xlu0 %1873, %v1563
        %v1875 = vpop.permute.xlu0 %1874
        %1876 = vset.pattern.permute.xlu0 0
        %1877 = vperm.xlu0 %1876, %v1572
        %v1878 = vpop.permute.xlu0 %1877
        %1879 = vset.pattern.permute.xlu0 0
        %1880 = vperm.xlu0 %1879, %v1581
        %v1881 = vpop.permute.xlu0 %1880
        %1882 = vset.pattern.permute.xlu0 0
        %1883 = vperm.xlu0 %1882, %v1590
        %v1884 = vpop.permute.xlu0 %1883
        %1885 = vset.pattern.permute.xlu0 0
        %1886 = vperm.xlu0 %1885, %v1599
        %v1887 = vpop.permute.xlu0 %1886
        %1888 = vset.pattern.permute.xlu0 0
        %1889 = vperm.xlu0 %1888, %v1608
        %v1890 = vpop.permute.xlu0 %1889
        %1891 = vset.pattern.permute.xlu0 0
        %1892 = vperm.xlu0 %1891, %v1617
        %v1893 = vpop.permute.xlu0 %1892
        %1894 = vset.pattern.permute.xlu0 0
        %1895 = vperm.xlu0 %1894, %v1626
        %v1896 = vpop.permute.xlu0 %1895
        %1897 = vset.pattern.permute.xlu0 0
        %1898 = vperm.xlu0 %1897, %v1635
        %v1899 = vpop.permute.xlu0 %1898
        %1900 = vset.pattern.permute.xlu0 0
        %1901 = vperm.xlu0 %1900, %v1644
        %v1902 = vpop.permute.xlu0 %1901
        %1903 = vset.pattern.permute.xlu0 0
        %1904 = vperm.xlu0 %1903, %v1653
        %v1905 = vpop.permute.xlu0 %1904
        %1906 = vset.pattern.permute.xlu0 0
        %1907 = vperm.xlu0 %1906, %v1662
        %v1908 = vpop.permute.xlu0 %1907
        %1909 = vset.pattern.permute.xlu0 0
        %1910 = vperm.xlu0 %1909, %v1671
        %v1911 = vpop.permute.xlu0 %1910
        %1912 = vset.pattern.permute.xlu0 0
        %1913 = vperm.xlu0 %1912, %v1680
        %v1914 = vpop.permute.xlu0 %1913
        %1915 = vset.pattern.permute.xlu0 0
        %1916 = vperm.xlu0 %1915, %v1689
        %v1917 = vpop.permute.xlu0 %1916
        %1918 = vset.pattern.permute.xlu0 0
        %1919 = vperm.xlu0 %1918, %v1698
        %v1920 = vpop.permute.xlu0 %1919
        %1921 = vset.pattern.permute.xlu0 0
        %1922 = vperm.xlu0 %1921, %v1707
        %v1923 = vpop.permute.xlu0 %1922
        %1924 = vset.pattern.permute.xlu0 0
        %1925 = vperm.xlu0 %1924, %v1716
        %v1926 = vpop.permute.xlu0 %1925
        %1927 = vset.pattern.permute.xlu0 0
        %1928 = vperm.xlu0 %1927, %v1725
        %v1929 = vpop.permute.xlu0 %1928
        %1930 = vset.pattern.permute.xlu0 0
        %1931 = vperm.xlu0 %1930, %v1734
        %v1932 = vpop.permute.xlu0 %1931
        %1933 = vset.pattern.permute.xlu0 0
        %1934 = vperm.xlu0 %1933, %v1743
        %v1935 = vpop.permute.xlu0 %1934
        %v1936 = vlaneseq
        %v1937 = vand.u32 %v1936, 127
        %v1938 = vperm.slane %v1746, %v1937
        %v1939 = vadd.s32 %v1937, 4294967288
        %v1940 = vperm.slane %v1749, %v1939
        %vm1941 = vcmask 130112
        %v1942 = vsel %vm1941, %v1940, %v1938
        %v1943 = vadd.s32 %v1937, 4294967280
        %v1944 = vperm.slane %v1752, %v1943
        %vm1945 = vcmask 195712
        %v1946 = vsel %vm1945, %v1944, %v1942
        %v1947 = vadd.s32 %v1937, 4294967272
        %v1948 = vperm.slane %v1755, %v1947
        %vm1949 = vcmask 261312
        %v1950 = vsel %vm1949, %v1948, %v1946
        %v1951 = vadd.s32 %v1937, 4294967264
        %v1952 = vperm.slane %v1758, %v1951
        %vm1953 = vcmask 326912
        %v1954 = vsel %vm1953, %v1952, %v1950
        %v1955 = vadd.s32 %v1937, 4294967256
        %v1956 = vperm.slane %v1761, %v1955
        %vm1957 = vcmask 392512
        %v1958 = vsel %vm1957, %v1956, %v1954
        %v1959 = vadd.s32 %v1937, 4294967248
        %v1960 = vperm.slane %v1764, %v1959
        %vm1961 = vcmask 458112
        %v1962 = vsel %vm1961, %v1960, %v1958
        %v1963 = vadd.s32 %v1937, 4294967240
        %v1964 = vperm.slane %v1767, %v1963
        %vm1965 = vcmask 523712
        %v1966 = vsel %vm1965, %v1964, %v1962
        %v1967 = vadd.s32 %v1937, 4294967232
        %v1968 = vperm.slane %v1770, %v1967
        %vm1969 = vcmask 589312
        %v1970 = vsel %vm1969, %v1968, %v1966
        %v1971 = vadd.s32 %v1937, 4294967224
        %v1972 = vperm.slane %v1773, %v1971
        %vm1973 = vcmask 654912
        %v1974 = vsel %vm1973, %v1972, %v1970
        %v1975 = vadd.s32 %v1937, 4294967216
        %v1976 = vperm.slane %v1776, %v1975
        %vm1977 = vcmask 720512
        %v1978 = vsel %vm1977, %v1976, %v1974
        %v1979 = vadd.s32 %v1937, 4294967208
        %v1980 = vperm.slane %v1779, %v1979
        %vm1981 = vcmask 786112
        %v1982 = vsel %vm1981, %v1980, %v1978
        %v1983 = vadd.s32 %v1937, 4294967200
        %v1984 = vperm.slane %v1782, %v1983
        %vm1985 = vcmask 851712
        %v1986 = vsel %vm1985, %v1984, %v1982
        %v1987 = vadd.s32 %v1937, 4294967192
        %v1988 = vperm.slane %v1785, %v1987
        %vm1989 = vcmask 917312
        %v1990 = vsel %vm1989, %v1988, %v1986
        %v1991 = vadd.s32 %v1937, 4294967184
        %v1992 = vperm.slane %v1788, %v1991
        %vm1993 = vcmask 982912
        %v1994 = vsel %vm1993, %v1992, %v1990
        %v1995 = vadd.s32 %v1937, 4294967176
        %v1996 = vperm.slane %v1791, %v1995
        %vm1997 = vcmask 1048512
        %v1998 = vsel %vm1997, %v1996, %v1994
        %v1999 = vperm.slane %v1794, %v1937
        %v2000 = vperm.slane %v1797, %v1939
        %v2001 = vsel %vm1941, %v2000, %v1999
        %v2002 = vperm.slane %v1800, %v1943
        %v2003 = vsel %vm1945, %v2002, %v2001
        %v2004 = vperm.slane %v1803, %v1947
        %v2005 = vsel %vm1949, %v2004, %v2003
        %v2006 = vperm.slane %v1806, %v1951
        %v2007 = vsel %vm1953, %v2006, %v2005
        %v2008 = vperm.slane %v1809, %v1955
        %v2009 = vsel %vm1957, %v2008, %v2007
        %v2010 = vperm.slane %v1812, %v1959
        %v2011 = vsel %vm1961, %v2010, %v2009
        %v2012 = vperm.slane %v1815, %v1963
        %v2013 = vsel %vm1965, %v2012, %v2011
        %v2014 = vperm.slane %v1818, %v1967
        %v2015 = vsel %vm1969, %v2014, %v2013
        %v2016 = vperm.slane %v1821, %v1971
        %v2017 = vsel %vm1973, %v2016, %v2015
        %v2018 = vperm.slane %v1824, %v1975
        %v2019 = vsel %vm1977, %v2018, %v2017
        %v2020 = vperm.slane %v1827, %v1979
        %v2021 = vsel %vm1981, %v2020, %v2019
        %v2022 = vperm.slane %v1830, %v1983
        %v2023 = vsel %vm1985, %v2022, %v2021
        %v2024 = vperm.slane %v1833, %v1987
        %v2025 = vsel %vm1989, %v2024, %v2023
        %v2026 = vperm.slane %v1836, %v1991
        %v2027 = vsel %vm1993, %v2026, %v2025
        %v2028 = vperm.slane %v1839, %v1995
        %v2029 = vsel %vm1997, %v2028, %v2027
        %v2030 = vperm.slane %v1842, %v1937
        %v2031 = vperm.slane %v1845, %v1939
        %v2032 = vsel %vm1941, %v2031, %v2030
        %v2033 = vperm.slane %v1848, %v1943
        %v2034 = vsel %vm1945, %v2033, %v2032
        %v2035 = vperm.slane %v1851, %v1947
        %v2036 = vsel %vm1949, %v2035, %v2034
        %v2037 = vperm.slane %v1854, %v1951
        %v2038 = vsel %vm1953, %v2037, %v2036
        %v2039 = vperm.slane %v1857, %v1955
        %v2040 = vsel %vm1957, %v2039, %v2038
        %v2041 = vperm.slane %v1860, %v1959
        %v2042 = vsel %vm1961, %v2041, %v2040
        %v2043 = vperm.slane %v1863, %v1963
        %v2044 = vsel %vm1965, %v2043, %v2042
        %v2045 = vperm.slane %v1866, %v1967
        %v2046 = vsel %vm1969, %v2045, %v2044
        %v2047 = vperm.slane %v1869, %v1971
        %v2048 = vsel %vm1973, %v2047, %v2046
        %v2049 = vperm.slane %v1872, %v1975
        %v2050 = vsel %vm1977, %v2049, %v2048
        %v2051 = vperm.slane %v1875, %v1979
        %v2052 = vsel %vm1981, %v2051, %v2050
        %v2053 = vperm.slane %v1878, %v1983
        %v2054 = vsel %vm1985, %v2053, %v2052
        %v2055 = vperm.slane %v1881, %v1987
        %v2056 = vsel %vm1989, %v2055, %v2054
        %v2057 = vperm.slane %v1884, %v1991
        %v2058 = vsel %vm1993, %v2057, %v2056
        %v2059 = vperm.slane %v1887, %v1995
        %v2060 = vsel %vm1997, %v2059, %v2058
        %v2061 = vperm.slane %v1890, %v1937
        %v2062 = vperm.slane %v1893, %v1939
        %v2063 = vsel %vm1941, %v2062, %v2061
        %v2064 = vperm.slane %v1896, %v1943
        %v2065 = vsel %vm1945, %v2064, %v2063
        %v2066 = vperm.slane %v1899, %v1947
        %v2067 = vsel %vm1949, %v2066, %v2065
        %v2068 = vperm.slane %v1902, %v1951
        %v2069 = vsel %vm1953, %v2068, %v2067
        %v2070 = vperm.slane %v1905, %v1955
        %v2071 = vsel %vm1957, %v2070, %v2069
        %v2072 = vperm.slane %v1908, %v1959
        %v2073 = vsel %vm1961, %v2072, %v2071
        %v2074 = vperm.slane %v1911, %v1963
        %v2075 = vsel %vm1965, %v2074, %v2073
        %v2076 = vperm.slane %v1914, %v1967
        %v2077 = vsel %vm1969, %v2076, %v2075
        %v2078 = vperm.slane %v1917, %v1971
        %v2079 = vsel %vm1973, %v2078, %v2077
        %v2080 = vperm.slane %v1920, %v1975
        %v2081 = vsel %vm1977, %v2080, %v2079
        %v2082 = vperm.slane %v1923, %v1979
        %v2083 = vsel %vm1981, %v2082, %v2081
        %v2084 = vperm.slane %v1926, %v1983
        %v2085 = vsel %vm1985, %v2084, %v2083
        %v2086 = vperm.slane %v1929, %v1987
        %v2087 = vsel %vm1989, %v2086, %v2085
        %v2088 = vperm.slane %v1932, %v1991
        %v2089 = vsel %vm1993, %v2088, %v2087
        %v2090 = vperm.slane %v1935, %v1995
        %v2091 = vsel %vm1997, %v2090, %v2089
        %v2092 = vrot.slane %v2029, 7
        %v2093 = vrot.slane %v2060, 6
        %v2094 = vrot.slane %v2091, 5
        %vm2095 = vcmask 1040384
        %v2096 = vsel %vm2095, %v1998, %v2092
        %vm2097 = vcmask 1042434
        %v2098 = vsel %vm2097, %v2093, %v2094
        %vm2099 = vcmask 1041408
        %v2100 = vsel %vm2099, %v2096, %v2098
        %v2102 = vlaneseq
        %vm2103 = vcmp.ge.s32.totalorder %v2102, 0
        %vm2104 = vcmp.lt.s32.totalorder %v2102, 512
        %vm2105 = vmand %vm2103, %vm2104
        %2106 = vst.msk [vmem:[%s164] sm:$0xf] %vm2105, %v2100
        %s2107 = sand.u32 %s104, 1
        %s2108 = scalar_lea.sflag [#allocation8], %s2107
        %s2109 = sand.u32 %s104, 1
        %s2110 = smul.addr %s2109, 4
        %s2111 = scalar_lea.vmem [#allocation7], %s2110
        // Predicated region
        $region40: #{gmf_forward.1} parent=31 // pred_check
          %p2112 = pneg %p114
        $region41: #{gmf_forward.1} parent=31 // pred_check_branch
          %2114 = sbr.rel (%p2112) target = $region43
        $region42: #{gmf_forward.1} parent=31 // pred_region
          %s2115 = smul.u32 4, %s33
          %2117 = vsyncadd %s2108, 0
          %s2118 = scalar_lea.hbm %s5, %s2115
          %s2120 = sshll.u32 %s2111, 4
          %s2121 = int_to_ptr.vmem [resolvable:$true] %s2120
          %s2122 = sshll.u32 %s2118, 4
          %s2123 = int_to_ptr.hbm [resolvable:$true] %s2122
          %2125 = dma.vmem_to_hbm [thread:$0]  %s2121, 64, %s2123, %s2108
        $region43: #{gmf_forward.1} parent=31 // pred_fallthru
          _
      $region32: #{gmf_forward.1} parent=5 // pred_fallthru
        _
      %p2126 = scmp.le.s32.totalorder 2, %s28
      // Predicated region
      $region44: #{gmf_forward.1} parent=5 // pred_check
        %p2127 = pneg %p2126
      $region45: #{gmf_forward.1} parent=5 // pred_check_branch
        %2129 = sbr.rel (%p2127) target = $region47
      $region46: #{gmf_forward.1} parent=5 // pred_region
        %s2130 = ssub.s32 %s28, 2
        // Predicated region
        $region48: #{gmf_forward.1} parent=46 // pred_check
          %p2131 = pneg %p120
        $region49: #{gmf_forward.1} parent=46 // pred_check_branch
          %2133 = sbr.rel (%p2131) target = $region51
        $region50: #{gmf_forward.1} parent=46 // pred_region
          %s2134 = sand.u32 %s105, 1
          %s2135 = scalar_lea.sflag [#allocation8], %s2134
          %s2136 = sand.u32 %s105, 1
          %s2137 = smul.addr %s2136, 4
          %s2138 = scalar_lea.vmem [#allocation7], %s2137
          %2140 = dma.done %s2135, 64
        $region51: #{gmf_forward.1} parent=46 // pred_fallthru
          _
      $region47: #{gmf_forward.1} parent=5 // pred_fallthru
        _
    $region6: #{gmf_forward.1} parent=1 // loop_footer
      %s32 = sadd.s32 1, %s28
    $region7: #{gmf_forward.1} parent=1 // loop_footer_branch
      %27 = sbr.rel target = $region3
    $region8: #{gmf_forward.1} parent=1 // loop_exit
      _
    %2141 = vsyncpa [#allocation8], 1
    %s2142 = scalar_lea.sflag [#allocation8], 1
    %2143 = vsyncpa %s2142, 1

</llo_original>
